<compile_context>
chip_gen: v7x
topology: tpu7x:2x2x1
jax: 0.10.0
libtpu: 0.0.40
codegen_flags: <defaults>
</compile_context>

<pallas_src>
import numpy as np

import jax
import jax.numpy as jnp
from jax.experimental import pallas as pl
from jax.experimental.pallas import tpu as pltpu

_EPS = 1e-5
_NUM_ACTIONS = 6


# ------------------------------------------------------------- utilities ---

def _round_up(a, b):
    return (a + b - 1) // b * b


def _cdiv(a, b):
    return (a + b - 1) // b


def _pad2(a, rows, cols):
    pad = [(0, 0)] * (a.ndim - 2) + [(0, rows - a.shape[-2]),
                                     (0, cols - a.shape[-1])]
    return jnp.pad(a, pad)


def _band(k, n_out, n_in, stride):
    """m[j, o, i] = 1 iff i == stride*o + j   (conv window membership)."""
    m = np.zeros((k, n_out, n_in), np.float32)
    for j in range(k):
        for o in range(n_out):
            i = stride * o + j
            if i < n_in:
                m[j, o, i] = 1.0
    return jnp.asarray(m)


# ----------------------------------------------------------------- kernel ---

def _make_kernel(cfg):
    BN, PITCH, RWS, k1, k2, k3, H3 = cfg
    f32 = jnp.float32
    bf16 = jnp.bfloat16

    def kernel(x_ref, w1_ref, s1_ref, t1_ref,
               w2_ref, s2_ref, t2_ref,
               w3_ref, s3_ref, t3_ref,
               wh_ref, bh_ref, out_ref,
               act1, act2, act3):
        # ---- conv1 + bn1 + relu: k1 banded matmuls (kernel column folded
        # into K lanes; kernel row i -> input parity i%2, row shift i//2).
        acc = None
        for i in range(k1):
            lhs = x_ref[i % 2, pl.ds(i // 2, RWS), :].astype(bf16)
            p = jnp.dot(lhs, w1_ref[i], preferred_element_type=f32)
            acc = p if acc is None else acc + p
        act1[pl.ds(0, RWS), :] = jnp.maximum(
            acc * s1_ref[...] + t1_ref[...], 0.0)

        # ---- conv2 + bn2 + relu: k2 banded matmuls over row-shifted act1.
        acc = None
        for i in range(k2):
            lhs = act1[pl.ds(i, RWS), :].astype(bf16)
            p = jnp.dot(lhs, w2_ref[i], preferred_element_type=f32)
            acc = p if acc is None else acc + p
        act2[pl.ds(0, RWS), :] = jnp.maximum(
            acc * s2_ref[...] + t2_ref[...], 0.0)

        # ---- conv3 + bn3 + relu.
        acc = None
        for i in range(k3):
            lhs = act2[pl.ds(i, RWS), :].astype(bf16)
            p = jnp.dot(lhs, w3_ref[i], preferred_element_type=f32)
            acc = p if acc is None else acc + p
        act3[pl.ds(0, RWS), :] = jnp.maximum(
            acc * s3_ref[...] + t3_ref[...], 0.0)

        # ---- linear head: one strided row slice + matmul per output height
        # (replaces the old per-(row, image) gather + concatenate loops).
        acc = None
        for h in range(H3):
            if BN > 1:
                lhs = act3[pl.ds(h, BN, stride=PITCH), :]
            else:
                lhs = act3[pl.ds(h, 1), :]
            p = jnp.dot(lhs, wh_ref[h], preferred_element_type=f32)
            acc = p if acc is None else acc + p
        out_ref[pl.ds(0, BN), :] = acc + bh_ref[...]

    return kernel


# ---------------------------------------------------------------- forward ---

def dqn_forward(params, x_nchw, block_n=16):
    """Forward pass matching the PyTorch DQN module. Returns (N, 6) float32."""
    N, C, H, W = x_nchw.shape

    cw1, cb1, g1, bt1, mu1, vr1 = params["conv1"]
    cw2, cb2, g2, bt2, mu2, vr2 = params["conv2"]
    cw3, cb3, g3, bt3, mu3, vr3 = params["conv3"]
    hw, hb = params["head"]

    co1, ci1, k1 = cw1.shape[0], cw1.shape[1], cw1.shape[2]
    co2, ci2, k2 = cw2.shape[0], cw2.shape[1], cw2.shape[2]
    co3, ci3, k3 = cw3.shape[0], cw3.shape[1], cw3.shape[2]
    n_out = hw.shape[0]

    # ---- static geometry (conv1 stride 2, conv2/conv3 stride 1, VALID) ----
    H1, W1 = (H - k1) // 2 + 1, (W - k1) // 2 + 1
    H2, W2 = H1 - k2 + 1, W1 - k2 + 1
    H3, W3 = H2 - k3 + 1, W2 - k3 + 1

    # lane-packed layouts: row = (image, height), lane = width*channels + chan
    LN0 = _round_up(W * C, 128)
    LN1 = _round_up(W1 * co1, 128)
    LN2 = _round_up(W2 * co2, 128)
    LN3 = _round_up(W3 * co3, 128)

    # batch blocking: BN images per grid step; keep G >= 2 and even so the
    # 'parallel' grid axis can use both v7x TensorCores.
    block_n = max(1, int(block_n))
    if N > 1:
        G = min(_round_up(N, 2), max(2, _round_up(_cdiv(N, block_n), 2)))
    else:
        G = 1
    BN = _cdiv(N, G)
    NP = G * BN

    PITCH = _round_up(max(H1, (H + 1) // 2), 8)   # per-image row pitch
    HPAD = 2 * PITCH                              # padded image height
    RWS = BN * PITCH                              # rows computed per grid step
    XR2 = RWS + _round_up((k1 - 1) // 2 + 1, 8)   # input rows per parity (+slack)
    RACT = RWS + _round_up(max(k2, k3), 8)        # activation scratch rows
    OUT_ROWS = _round_up(BN, 8)

    # ---- fold eval-mode BN (+ conv bias) into scale/shift, tiled over the
    # packed (width, channel) lane layout; padded lanes are exactly zero. ----
    def fold_bn(bias, gamma, beta, mean, var, width, lanes):
        s = gamma / jnp.sqrt(var + _EPS)
        t = beta + (bias - mean) * s
        return (_pad2(jnp.tile(s, width).reshape(1, -1), 1, lanes),
                _pad2(jnp.tile(t, width).reshape(1, -1), 1, lanes))

    s1p, t1p = fold_bn(cb1, g1, bt1, mu1, vr1, W1, LN1)
    s2p, t2p = fold_bn(cb2, g2, bt2, mu2, vr2, W2, LN2)
    s3p, t3p = fold_bn(cb3, g3, bt3, mu3, vr3, W3, LN3)

    # ---- banded conv weights: horizontal kernel offset folded into K lanes,
    # so each conv needs only k (vertical) MXU matmuls. -----------------------
    m1 = _band(k1, W1, W, 2)      # [j, w1, xcol]
    m2 = _band(k2, W2, W1, 1)     # [j, w2, w1]
    m3 = _band(k3, W3, W2, 1)     # [j, w3, w2]
    w1b = jnp.einsum('jwx,ocij->ixcwo', m1, cw1).reshape(k1, W * ci1, W1 * co1)
    w2b = jnp.einsum('jvw,ocij->iwcvo', m2, cw2).reshape(k2, W1 * ci2, W2 * co2)
    w3b = jnp.einsum('jvw,ocij->iwcvo', m3, cw3).reshape(k3, W2 * ci3, W3 * co3)
    w1b = _pad2(w1b, LN0, LN1).astype(jnp.bfloat16)
    w2b = _pad2(w2b, LN1, LN2).astype(jnp.bfloat16)
    w3b = _pad2(w3b, LN2, LN3).astype(jnp.bfloat16)

    # head: PyTorch NCHW flatten order (c, h, w) + packed act3 layout folded in
    whb = hw.reshape(n_out, co3, H3, W3).transpose(2, 3, 1, 0)    # (h3,w3,c,a)
    whb = _pad2(whb.reshape(H3, W3 * co3, n_out), LN3, 128)
    bhp = _pad2(hb.reshape(1, -1), 1, 128)

    # ---- input: NCHW -> parity-split packed rows (G, 2, XR2, LN0).  No
    # im2col: conv1's patch gather happens on the MXU via the banded weights.
    xh = jnp.transpose(x_nchw, (0, 2, 3, 1))                      # (N,H,W,C)
    xh = jnp.pad(xh, ((0, NP - N), (0, HPAD - H), (0, 0), (0, 0)))
    xf = xh.reshape(NP * HPAD, W * C)
    if LN0 > W * C:
        xf = jnp.pad(xf, ((0, 0), (0, LN0 - W * C)))
    xf = xf.reshape(G, BN * PITCH, 2, LN0).transpose(0, 2, 1, 3)  # (G,2,·,LN0)
    xf = jnp.pad(xf, ((0, 0), (0, 0), (0, XR2 - RWS), (0, 0)))

    kernel = _make_kernel((BN, PITCH, RWS, k1, k2, k3, H3))

    flops = 2 * G * (k1 * RWS * LN0 * LN1 + k2 * RWS * LN1 * LN2
                     + k3 * RWS * LN2 * LN3 + H3 * BN * LN3 * 128)
    bytes_accessed = (4 * (xf.size + whb.size + G * OUT_ROWS * 128)
                      + 2 * (w1b.size + w2b.size + w3b.size))

    vmem_est = (2 * 2 * XR2 * LN0 * 4                        # x block (dbl buf)
                + 2 * 2 * (w1b.size + w2b.size + w3b.size)   # conv weights
                + 2 * 4 * whb.size                           # head weights
                + RACT * (LN1 + LN2 + LN3) * 4               # act scratch
                + 2 * OUT_ROWS * 128 * 4) + (2 << 20)
    vmem_limit = int(min(64 * 2 ** 20, max(32 * 2 ** 20, 2 * vmem_est)))

    vec1 = pl.BlockSpec((1, LN1), lambda b: (0, 0))
    vec2 = pl.BlockSpec((1, LN2), lambda b: (0, 0))
    vec3 = pl.BlockSpec((1, LN3), lambda b: (0, 0))
    vech = pl.BlockSpec((1, 128), lambda b: (0, 0))

    out = pl.pallas_call(
        kernel,
        out_shape=jax.ShapeDtypeStruct((G, OUT_ROWS, 128), jnp.float32),
        grid_spec=pltpu.PrefetchScalarGridSpec(
            num_scalar_prefetch=0,
            grid=(G,),
            in_specs=[
                pl.BlockSpec((None, 2, XR2, LN0), lambda b: (b, 0, 0, 0)),  # x
                pl.BlockSpec((k1, LN0, LN1), lambda b: (0, 0, 0)),          # w1
                vec1, vec1,                                                 # s1,t1
                pl.BlockSpec((k2, LN1, LN2), lambda b: (0, 0, 0)),          # w2
                vec2, vec2,                                                 # s2,t2
                pl.BlockSpec((k3, LN2, LN3), lambda b: (0, 0, 0)),          # w3
                vec3, vec3,                                                 # s3,t3
                pl.BlockSpec((H3, LN3, 128), lambda b: (0, 0, 0)),          # head w
                vech,                                                       # head b
            ],
            out_specs=pl.BlockSpec((None, OUT_ROWS, 128), lambda b: (b, 0, 0)),
            scratch_shapes=[
                pltpu.VMEM((RACT, LN1), jnp.float32),
                pltpu.VMEM((RACT, LN2), jnp.float32),
                pltpu.VMEM((RACT, LN3), jnp.float32),
            ],
        ),
        compiler_params=pltpu.CompilerParams(
            dimension_semantics=("parallel",),
            vmem_limit_bytes=vmem_limit),
        cost_estimate=pl.CostEstimate(
            flops=flops, transcendentals=0, bytes_accessed=bytes_accessed),
    )(xf, w1b, s1p, t1p, w2b, s2p, t2p, w3b, s3p, t3p, whb, bhp)

    return out[:, :BN, :].reshape(NP, 128)[:N, :n_out]


# ------------------------------------------------------------- reference ----

def dqn_reference(params, x_nchw):
    x = x_nchw
    strides = {"conv1": 2, "conv2": 1, "conv3": 1}
    for name in ("conv1", "conv2", "conv3"):
        w, b, gamma, beta, mean, var = params[name]
        s = strides[name]
        x = jax.lax.conv_general_dilated(
            x, w, (s, s), "VALID",
            dimension_numbers=("NCHW", "OIHW", "NCHW"))
        x = x + b.reshape(1, -1, 1, 1)
        x = (x - mean.reshape(1, -1, 1, 1)) / jnp.sqrt(
            var.reshape(1, -1, 1, 1) + _EPS) * gamma.reshape(1, -1, 1, 1) \
            + beta.reshape(1, -1, 1, 1)
        x = jnp.maximum(x, 0.0)
    feat = x.reshape(x.shape[0], -1)
    hw, hb = params["head"]
    return feat @ hw.T + hb


# ----------------------------------------------------------------- params ---

def init_params(key, h, w, c=8):
    def out_size(n, k, s):
        return (n - k) // s + 1

    h3 = out_size(out_size(out_size(h, 4, 2), 2, 1), 2, 1)
    w3 = out_size(out_size(out_size(w, 4, 2), 2, 1), 2, 1)
    feat = h3 * w3 * 32

    keys = iter(jax.random.split(key, 24))

    def conv_block(ci, co, k):
        wgt = 0.05 * jax.random.normal(next(keys), (co, ci, k, k), jnp.float32)
        b = 0.05 * jax.random.normal(next(keys), (co,), jnp.float32)
        gamma = 1.0 + 0.1 * jax.random.normal(next(keys), (co,), jnp.float32)
        beta = 0.1 * jax.random.normal(next(keys), (co,), jnp.float32)
        mean = 0.1 * jax.random.normal(next(keys), (co,), jnp.float32)
        var = 1.0 + 0.1 * jax.random.uniform(next(keys), (co,), jnp.float32)
        return (wgt, b, gamma, beta, mean, var)

    return {
        "conv1": conv_block(c, 16, 4),
        "conv2": conv_block(16, 32, 2),
        "conv3": conv_block(32, 32, 2),
        "head": (0.05 * jax.random.normal(next(keys),
                                          (_NUM_ACTIONS, feat), jnp.float32),
                 0.05 * jax.random.normal(next(keys),
                                          (_NUM_ACTIONS,), jnp.float32)),
    }


# ------------------------------------------------------------------- main ---

if __name__ == "__main__":
    N, C, H, W = 2, 8, 16, 16
    key = jax.random.PRNGKey(0)
    k_param, k_x = jax.random.split(key)
    params = init_params(k_param, H, W, C)
    x = jax.random.normal(k_x, (N, C, H, W), jnp.float32)

    fwd = jax.jit(dqn_forward)
    out = jax.block_until_ready(fwd(params, x))
    ref = jax.block_until_ready(dqn_reference(params, x))

    assert out.shape == (N, _NUM_ACTIONS), out.shape
    # bf16 MXU operands (weights + LHS casts) vs f32 reference -> small error.
    err = float(jnp.max(jnp.abs(out - ref)))
    assert jnp.allclose(out, ref, atol=3e-2, rtol=3e-2), ("mismatch", err)
    print("KERNEL_OK")
</pallas_src>

<mosaic_0001>
module attributes {stable_mosaic.version = 11 : i64} {
  func.func @kernel(%arg0: i32, %arg1: memref<1x2x16x128xf32, #tpu.memory_space<vmem>>, %arg2: memref<4x128x128xbf16, #tpu.memory_space<vmem>>, %arg3: memref<1x128xf32, #tpu.memory_space<vmem>>, %arg4: memref<1x128xf32, #tpu.memory_space<vmem>>, %arg5: memref<2x128x256xbf16, #tpu.memory_space<vmem>>, %arg6: memref<1x256xf32, #tpu.memory_space<vmem>>, %arg7: memref<1x256xf32, #tpu.memory_space<vmem>>, %arg8: memref<2x256x256xbf16, #tpu.memory_space<vmem>>, %arg9: memref<1x256xf32, #tpu.memory_space<vmem>>, %arg10: memref<1x256xf32, #tpu.memory_space<vmem>>, %arg11: memref<5x256x128xf32, #tpu.memory_space<vmem>>, %arg12: memref<1x128xf32, #tpu.memory_space<vmem>>, %arg13: memref<1x8x128xf32, #tpu.memory_space<vmem>>, %arg14: memref<16x128xf32, #tpu.memory_space<vmem>>, %arg15: memref<16x256xf32, #tpu.memory_space<vmem>>, %arg16: memref<16x256xf32, #tpu.memory_space<vmem>>) attributes {dimension_semantics = [#tpu.dimension_semantics<parallel>], iteration_bounds = array<i64: 2>, scalar_prefetch = 0 : i64, scratch_operands = 3 : i64, tpu.core_type = #tpu.core_type<tc>, window_params = [{transform_indices = @transform_0, window_bounds = array<i64: 1, 2, 16, 128>}, {pipeline_mode = #tpu.pipeline_mode<synchronous>, transform_indices = @transform_1, window_bounds = array<i64: 4, 128, 128>}, {pipeline_mode = #tpu.pipeline_mode<synchronous>, transform_indices = @transform_2, window_bounds = array<i64: 1, 128>}, {pipeline_mode = #tpu.pipeline_mode<synchronous>, transform_indices = @transform_3, window_bounds = array<i64: 1, 128>}, {pipeline_mode = #tpu.pipeline_mode<synchronous>, transform_indices = @transform_4, window_bounds = array<i64: 2, 128, 256>}, {pipeline_mode = #tpu.pipeline_mode<synchronous>, transform_indices = @transform_5, window_bounds = array<i64: 1, 256>}, {pipeline_mode = #tpu.pipeline_mode<synchronous>, transform_indices = @transform_6, window_bounds = array<i64: 1, 256>}, {pipeline_mode = #tpu.pipeline_mode<synchronous>, transform_indices = @transform_7, window_bounds = array<i64: 2, 256, 256>}, {pipeline_mode = #tpu.pipeline_mode<synchronous>, transform_indices = @transform_8, window_bounds = array<i64: 1, 256>}, {pipeline_mode = #tpu.pipeline_mode<synchronous>, transform_indices = @transform_9, window_bounds = array<i64: 1, 256>}, {pipeline_mode = #tpu.pipeline_mode<synchronous>, transform_indices = @transform_10, window_bounds = array<i64: 5, 256, 128>}, {pipeline_mode = #tpu.pipeline_mode<synchronous>, transform_indices = @transform_11, window_bounds = array<i64: 1, 128>}, {transform_indices = @transform_12, window_bounds = array<i64: 1, 8, 128>}]} {
    %c0 = arith.constant 0 : index
    %c0_0 = arith.constant 0 : index
    %c0_1 = arith.constant 0 : index
    %c0_2 = arith.constant 0 : index
    %0 = vector.load %arg1[%c0, %c0_0, %c0_1, %c0_2] : memref<1x2x16x128xf32, #tpu.memory_space<vmem>>, vector<1x1x8x128xf32>
    %1 = vector.shape_cast %0 : vector<1x1x8x128xf32> to vector<8x128xf32>
    %2 = arith.truncf %1 : vector<8x128xf32> to vector<8x128xbf16>
    %c0_3 = arith.constant 0 : index
    %c0_4 = arith.constant 0 : index
    %c0_5 = arith.constant 0 : index
    %3 = vector.load %arg2[%c0_3, %c0_4, %c0_5] : memref<4x128x128xbf16, #tpu.memory_space<vmem>>, vector<1x128x128xbf16>
    %4 = vector.shape_cast %3 : vector<1x128x128xbf16> to vector<128x128xbf16>
    %cst = arith.constant dense<0.000000e+00> : vector<8x128xf32>
    %5 = tpu.matmul %2, %4, %cst {dimension_numbers = #tpu.dot_dimension_numbers<[1], [0], [0], [1], [0, 0, 1, 1], [], []>} : vector<8x128xbf16>, vector<128x128xbf16>, vector<8x128xf32> -> vector<8x128xf32>
    %c0_6 = arith.constant 0 : index
    %c1 = arith.constant 1 : index
    %c0_7 = arith.constant 0 : index
    %c0_8 = arith.constant 0 : index
    %6 = vector.load %arg1[%c0_6, %c1, %c0_7, %c0_8] : memref<1x2x16x128xf32, #tpu.memory_space<vmem>>, vector<1x1x8x128xf32>
    %7 = vector.shape_cast %6 : vector<1x1x8x128xf32> to vector<8x128xf32>
    %8 = arith.truncf %7 : vector<8x128xf32> to vector<8x128xbf16>
    %c1_9 = arith.constant 1 : index
    %c0_10 = arith.constant 0 : index
    %c0_11 = arith.constant 0 : index
    %9 = vector.load %arg2[%c1_9, %c0_10, %c0_11] : memref<4x128x128xbf16, #tpu.memory_space<vmem>>, vector<1x128x128xbf16>
    %10 = vector.shape_cast %9 : vector<1x128x128xbf16> to vector<128x128xbf16>
    %cst_12 = arith.constant dense<0.000000e+00> : vector<8x128xf32>
    %11 = tpu.matmul %8, %10, %cst_12 {dimension_numbers = #tpu.dot_dimension_numbers<[1], [0], [0], [1], [0, 0, 1, 1], [], []>} : vector<8x128xbf16>, vector<128x128xbf16>, vector<8x128xf32> -> vector<8x128xf32>
    %12 = arith.addf %5, %11 : vector<8x128xf32>
    %c0_13 = arith.constant 0 : index
    %c0_14 = arith.constant 0 : index
    %c1_15 = arith.constant 1 : index
    %c0_16 = arith.constant 0 : index
    %13 = vector.load %arg1[%c0_13, %c0_14, %c1_15, %c0_16] : memref<1x2x16x128xf32, #tpu.memory_space<vmem>>, vector<1x1x8x128xf32>
    %14 = vector.shape_cast %13 : vector<1x1x8x128xf32> to vector<8x128xf32>
    %15 = arith.truncf %14 : vector<8x128xf32> to vector<8x128xbf16>
    %c2 = arith.constant 2 : index
    %c0_17 = arith.constant 0 : index
    %c0_18 = arith.constant 0 : index
    %16 = vector.load %arg2[%c2, %c0_17, %c0_18] : memref<4x128x128xbf16, #tpu.memory_space<vmem>>, vector<1x128x128xbf16>
    %17 = vector.shape_cast %16 : vector<1x128x128xbf16> to vector<128x128xbf16>
    %cst_19 = arith.constant dense<0.000000e+00> : vector<8x128xf32>
    %18 = tpu.matmul %15, %17, %cst_19 {dimension_numbers = #tpu.dot_dimension_numbers<[1], [0], [0], [1], [0, 0, 1, 1], [], []>} : vector<8x128xbf16>, vector<128x128xbf16>, vector<8x128xf32> -> vector<8x128xf32>
    %19 = arith.addf %12, %18 : vector<8x128xf32>
    %c0_20 = arith.constant 0 : index
    %c1_21 = arith.constant 1 : index
    %c1_22 = arith.constant 1 : index
    %c0_23 = arith.constant 0 : index
    %20 = vector.load %arg1[%c0_20, %c1_21, %c1_22, %c0_23] : memref<1x2x16x128xf32, #tpu.memory_space<vmem>>, vector<1x1x8x128xf32>
    %21 = vector.shape_cast %20 : vector<1x1x8x128xf32> to vector<8x128xf32>
    %22 = arith.truncf %21 : vector<8x128xf32> to vector<8x128xbf16>
    %c3 = arith.constant 3 : index
    %c0_24 = arith.constant 0 : index
    %c0_25 = arith.constant 0 : index
    %23 = vector.load %arg2[%c3, %c0_24, %c0_25] : memref<4x128x128xbf16, #tpu.memory_space<vmem>>, vector<1x128x128xbf16>
    %24 = vector.shape_cast %23 : vector<1x128x128xbf16> to vector<128x128xbf16>
    %cst_26 = arith.constant dense<0.000000e+00> : vector<8x128xf32>
    %25 = tpu.matmul %22, %24, %cst_26 {dimension_numbers = #tpu.dot_dimension_numbers<[1], [0], [0], [1], [0, 0, 1, 1], [], []>} : vector<8x128xbf16>, vector<128x128xbf16>, vector<8x128xf32> -> vector<8x128xf32>
    %26 = arith.addf %19, %25 : vector<8x128xf32>
    %c0_27 = arith.constant 0 : index
    %c0_28 = arith.constant 0 : index
    %27 = vector.load %arg3[%c0_27, %c0_28] : memref<1x128xf32, #tpu.memory_space<vmem>>, vector<1x128xf32>
    %28 = vector.broadcast %27 : vector<1x128xf32> to vector<8x128xf32>
    %29 = arith.mulf %26, %28 : vector<8x128xf32>
    %c0_29 = arith.constant 0 : index
    %c0_30 = arith.constant 0 : index
    %30 = vector.load %arg4[%c0_29, %c0_30] : memref<1x128xf32, #tpu.memory_space<vmem>>, vector<1x128xf32>
    %31 = vector.broadcast %30 : vector<1x128xf32> to vector<8x128xf32>
    %32 = arith.addf %29, %31 : vector<8x128xf32>
    %cst_31 = arith.constant 0.000000e+00 : f32
    %33 = vector.broadcast %cst_31 : f32 to vector<8x128xf32>
    %34 = arith.maximumf %32, %33 : vector<8x128xf32>
    %c0_32 = arith.constant 0 : index
    %c0_33 = arith.constant 0 : index
    %35 = vector.load %arg14[%c0_32, %c0_33] : memref<16x128xf32, #tpu.memory_space<vmem>>, vector<8x128xf32>
    tpu.vector_store %arg14[%c0_32, %c0_33], %34 {strides = array<i32>} : memref<16x128xf32, #tpu.memory_space<vmem>>, vector<8x128xf32>,
    %c0_34 = arith.constant 0 : index
    %c0_35 = arith.constant 0 : index
    %36 = vector.load %arg14[%c0_34, %c0_35] : memref<16x128xf32, #tpu.memory_space<vmem>>, vector<8x128xf32>
    %37 = arith.truncf %36 : vector<8x128xf32> to vector<8x128xbf16>
    %c0_36 = arith.constant 0 : index
    %c0_37 = arith.constant 0 : index
    %c0_38 = arith.constant 0 : index
    %38 = vector.load %arg5[%c0_36, %c0_37, %c0_38] : memref<2x128x256xbf16, #tpu.memory_space<vmem>>, vector<1x128x256xbf16>
    %39 = vector.shape_cast %38 : vector<1x128x256xbf16> to vector<128x256xbf16>
    %cst_39 = arith.constant dense<0.000000e+00> : vector<8x256xf32>
    %40 = tpu.matmul %37, %39, %cst_39 {dimension_numbers = #tpu.dot_dimension_numbers<[1], [0], [0], [1], [0, 0, 1, 1], [], []>} : vector<8x128xbf16>, vector<128x256xbf16>, vector<8x256xf32> -> vector<8x256xf32>
    %c1_40 = arith.constant 1 : index
    %c0_41 = arith.constant 0 : index
    %41 = vector.load %arg14[%c1_40, %c0_41] : memref<16x128xf32, #tpu.memory_space<vmem>>, vector<8x128xf32>
    %42 = arith.truncf %41 : vector<8x128xf32> to vector<8x128xbf16>
    %c1_42 = arith.constant 1 : index
    %c0_43 = arith.constant 0 : index
    %c0_44 = arith.constant 0 : index
    %43 = vector.load %arg5[%c1_42, %c0_43, %c0_44] : memref<2x128x256xbf16, #tpu.memory_space<vmem>>, vector<1x128x256xbf16>
    %44 = vector.shape_cast %43 : vector<1x128x256xbf16> to vector<128x256xbf16>
    %cst_45 = arith.constant dense<0.000000e+00> : vector<8x256xf32>
    %45 = tpu.matmul %42, %44, %cst_45 {dimension_numbers = #tpu.dot_dimension_numbers<[1], [0], [0], [1], [0, 0, 1, 1], [], []>} : vector<8x128xbf16>, vector<128x256xbf16>, vector<8x256xf32> -> vector<8x256xf32>
    %46 = arith.addf %40, %45 : vector<8x256xf32>
    %c0_46 = arith.constant 0 : index
    %c0_47 = arith.constant 0 : index
    %47 = vector.load %arg6[%c0_46, %c0_47] : memref<1x256xf32, #tpu.memory_space<vmem>>, vector<1x256xf32>
    %48 = vector.broadcast %47 : vector<1x256xf32> to vector<8x256xf32>
    %49 = arith.mulf %46, %48 : vector<8x256xf32>
    %c0_48 = arith.constant 0 : index
    %c0_49 = arith.constant 0 : index
    %50 = vector.load %arg7[%c0_48, %c0_49] : memref<1x256xf32, #tpu.memory_space<vmem>>, vector<1x256xf32>
    %51 = vector.broadcast %50 : vector<1x256xf32> to vector<8x256xf32>
    %52 = arith.addf %49, %51 : vector<8x256xf32>
    %cst_50 = arith.constant 0.000000e+00 : f32
    %53 = vector.broadcast %cst_50 : f32 to vector<8x256xf32>
    %54 = arith.maximumf %52, %53 : vector<8x256xf32>
    %c0_51 = arith.constant 0 : index
    %c0_52 = arith.constant 0 : index
    %55 = vector.load %arg15[%c0_51, %c0_52] : memref<16x256xf32, #tpu.memory_space<vmem>>, vector<8x256xf32>
    tpu.vector_store %arg15[%c0_51, %c0_52], %54 {strides = array<i32>} : memref<16x256xf32, #tpu.memory_space<vmem>>, vector<8x256xf32>,
    %c0_53 = arith.constant 0 : index
    %c0_54 = arith.constant 0 : index
    %56 = vector.load %arg15[%c0_53, %c0_54] : memref<16x256xf32, #tpu.memory_space<vmem>>, vector<8x256xf32>
    %57 = arith.truncf %56 : vector<8x256xf32> to vector<8x256xbf16>
    %c0_55 = arith.constant 0 : index
    %c0_56 = arith.constant 0 : index
    %c0_57 = arith.constant 0 : index
    %58 = vector.load %arg8[%c0_55, %c0_56, %c0_57] : memref<2x256x256xbf16, #tpu.memory_space<vmem>>, vector<1x256x256xbf16>
    %59 = vector.shape_cast %58 : vector<1x256x256xbf16> to vector<256x256xbf16>
    %cst_58 = arith.constant dense<0.000000e+00> : vector<8x256xf32>
    %60 = tpu.matmul %57, %59, %cst_58 {dimension_numbers = #tpu.dot_dimension_numbers<[1], [0], [0], [1], [0, 0, 1, 1], [], []>} : vector<8x256xbf16>, vector<256x256xbf16>, vector<8x256xf32> -> vector<8x256xf32>
    %c1_59 = arith.constant 1 : index
    %c0_60 = arith.constant 0 : index
    %61 = vector.load %arg15[%c1_59, %c0_60] : memref<16x256xf32, #tpu.memory_space<vmem>>, vector<8x256xf32>
    %62 = arith.truncf %61 : vector<8x256xf32> to vector<8x256xbf16>
    %c1_61 = arith.constant 1 : index
    %c0_62 = arith.constant 0 : index
    %c0_63 = arith.constant 0 : index
    %63 = vector.load %arg8[%c1_61, %c0_62, %c0_63] : memref<2x256x256xbf16, #tpu.memory_space<vmem>>, vector<1x256x256xbf16>
    %64 = vector.shape_cast %63 : vector<1x256x256xbf16> to vector<256x256xbf16>
    %cst_64 = arith.constant dense<0.000000e+00> : vector<8x256xf32>
    %65 = tpu.matmul %62, %64, %cst_64 {dimension_numbers = #tpu.dot_dimension_numbers<[1], [0], [0], [1], [0, 0, 1, 1], [], []>} : vector<8x256xbf16>, vector<256x256xbf16>, vector<8x256xf32> -> vector<8x256xf32>
    %66 = arith.addf %60, %65 : vector<8x256xf32>
    %c0_65 = arith.constant 0 : index
    %c0_66 = arith.constant 0 : index
    %67 = vector.load %arg9[%c0_65, %c0_66] : memref<1x256xf32, #tpu.memory_space<vmem>>, vector<1x256xf32>
    %68 = vector.broadcast %67 : vector<1x256xf32> to vector<8x256xf32>
    %69 = arith.mulf %66, %68 : vector<8x256xf32>
    %c0_67 = arith.constant 0 : index
    %c0_68 = arith.constant 0 : index
    %70 = vector.load %arg10[%c0_67, %c0_68] : memref<1x256xf32, #tpu.memory_space<vmem>>, vector<1x256xf32>
    %71 = vector.broadcast %70 : vector<1x256xf32> to vector<8x256xf32>
    %72 = arith.addf %69, %71 : vector<8x256xf32>
    %cst_69 = arith.constant 0.000000e+00 : f32
    %73 = vector.broadcast %cst_69 : f32 to vector<8x256xf32>
    %74 = arith.maximumf %72, %73 : vector<8x256xf32>
    %c0_70 = arith.constant 0 : index
    %c0_71 = arith.constant 0 : index
    %75 = vector.load %arg16[%c0_70, %c0_71] : memref<16x256xf32, #tpu.memory_space<vmem>>, vector<8x256xf32>
    tpu.vector_store %arg16[%c0_70, %c0_71], %74 {strides = array<i32>} : memref<16x256xf32, #tpu.memory_space<vmem>>, vector<8x256xf32>,
    %c0_72 = arith.constant 0 : index
    %c0_73 = arith.constant 0 : index
    %76 = vector.load %arg16[%c0_72, %c0_73] : memref<16x256xf32, #tpu.memory_space<vmem>>, vector<1x256xf32>
    %c0_74 = arith.constant 0 : index
    %c0_75 = arith.constant 0 : index
    %c0_76 = arith.constant 0 : index
    %77 = vector.load %arg11[%c0_74, %c0_75, %c0_76] : memref<5x256x128xf32, #tpu.memory_space<vmem>>, vector<1x256x128xf32>
    %78 = vector.shape_cast %77 : vector<1x256x128xf32> to vector<256x128xf32>
    %cst_77 = arith.constant dense<0.000000e+00> : vector<1x128xf32>
    %79 = tpu.matmul %76, %78, %cst_77 {dimension_numbers = #tpu.dot_dimension_numbers<[1], [0], [0], [1], [0, 0, 1, 1], [], []>} : vector<1x256xf32>, vector<256x128xf32>, vector<1x128xf32> -> vector<1x128xf32>
    %c1_78 = arith.constant 1 : index
    %c0_79 = arith.constant 0 : index
    %80 = vector.load %arg16[%c1_78, %c0_79] : memref<16x256xf32, #tpu.memory_space<vmem>>, vector<1x256xf32>
    %c1_80 = arith.constant 1 : index
    %c0_81 = arith.constant 0 : index
    %c0_82 = arith.constant 0 : index
    %81 = vector.load %arg11[%c1_80, %c0_81, %c0_82] : memref<5x256x128xf32, #tpu.memory_space<vmem>>, vector<1x256x128xf32>
    %82 = vector.shape_cast %81 : vector<1x256x128xf32> to vector<256x128xf32>
    %cst_83 = arith.constant dense<0.000000e+00> : vector<1x128xf32>
    %83 = tpu.matmul %80, %82, %cst_83 {dimension_numbers = #tpu.dot_dimension_numbers<[1], [0], [0], [1], [0, 0, 1, 1], [], []>} : vector<1x256xf32>, vector<256x128xf32>, vector<1x128xf32> -> vector<1x128xf32>
    %84 = arith.addf %79, %83 : vector<1x128xf32>
    %c2_84 = arith.constant 2 : index
    %c0_85 = arith.constant 0 : index
    %85 = vector.load %arg16[%c2_84, %c0_85] : memref<16x256xf32, #tpu.memory_space<vmem>>, vector<1x256xf32>
    %c2_86 = arith.constant 2 : index
    %c0_87 = arith.constant 0 : index
    %c0_88 = arith.constant 0 : index
    %86 = vector.load %arg11[%c2_86, %c0_87, %c0_88] : memref<5x256x128xf32, #tpu.memory_space<vmem>>, vector<1x256x128xf32>
    %87 = vector.shape_cast %86 : vector<1x256x128xf32> to vector<256x128xf32>
    %cst_89 = arith.constant dense<0.000000e+00> : vector<1x128xf32>
    %88 = tpu.matmul %85, %87, %cst_89 {dimension_numbers = #tpu.dot_dimension_numbers<[1], [0], [0], [1], [0, 0, 1, 1], [], []>} : vector<1x256xf32>, vector<256x128xf32>, vector<1x128xf32> -> vector<1x128xf32>
    %89 = arith.addf %84, %88 : vector<1x128xf32>
    %c3_90 = arith.constant 3 : index
    %c0_91 = arith.constant 0 : index
    %90 = vector.load %arg16[%c3_90, %c0_91] : memref<16x256xf32, #tpu.memory_space<vmem>>, vector<1x256xf32>
    %c3_92 = arith.constant 3 : index
    %c0_93 = arith.constant 0 : index
    %c0_94 = arith.constant 0 : index
    %91 = vector.load %arg11[%c3_92, %c0_93, %c0_94] : memref<5x256x128xf32, #tpu.memory_space<vmem>>, vector<1x256x128xf32>
    %92 = vector.shape_cast %91 : vector<1x256x128xf32> to vector<256x128xf32>
    %cst_95 = arith.constant dense<0.000000e+00> : vector<1x128xf32>
    %93 = tpu.matmul %90, %92, %cst_95 {dimension_numbers = #tpu.dot_dimension_numbers<[1], [0], [0], [1], [0, 0, 1, 1], [], []>} : vector<1x256xf32>, vector<256x128xf32>, vector<1x128xf32> -> vector<1x128xf32>
    %94 = arith.addf %89, %93 : vector<1x128xf32>
    %c4 = arith.constant 4 : index
    %c0_96 = arith.constant 0 : index
    %95 = vector.load %arg16[%c4, %c0_96] : memref<16x256xf32, #tpu.memory_space<vmem>>, vector<1x256xf32>
    %c4_97 = arith.constant 4 : index
    %c0_98 = arith.constant 0 : index
    %c0_99 = arith.constant 0 : index
    %96 = vector.load %arg11[%c4_97, %c0_98, %c0_99] : memref<5x256x128xf32, #tpu.memory_space<vmem>>, vector<1x256x128xf32>
    %97 = vector.shape_cast %96 : vector<1x256x128xf32> to vector<256x128xf32>
    %cst_100 = arith.constant dense<0.000000e+00> : vector<1x128xf32>
    %98 = tpu.matmul %95, %97, %cst_100 {dimension_numbers = #tpu.dot_dimension_numbers<[1], [0], [0], [1], [0, 0, 1, 1], [], []>} : vector<1x256xf32>, vector<256x128xf32>, vector<1x128xf32> -> vector<1x128xf32>
    %99 = arith.addf %94, %98 : vector<1x128xf32>
    %c0_101 = arith.constant 0 : index
    %c0_102 = arith.constant 0 : index
    %100 = vector.load %arg12[%c0_101, %c0_102] : memref<1x128xf32, #tpu.memory_space<vmem>>, vector<1x128xf32>
    %101 = arith.addf %99, %100 : vector<1x128xf32>
    %c0_103 = arith.constant 0 : index
    %c0_104 = arith.constant 0 : index
    %c0_105 = arith.constant 0 : index
    %102 = vector.load %arg13[%c0_103, %c0_104, %c0_105] : memref<1x8x128xf32, #tpu.memory_space<vmem>>, vector<1x1x128xf32>
    %103 = vector.shape_cast %102 : vector<1x1x128xf32> to vector<1x128xf32>
    %104 = vector.shape_cast %101 : vector<1x128xf32> to vector<1x1x128xf32>
    tpu.vector_store %arg13[%c0_103, %c0_104, %c0_105], %104 {strides = array<i32>} : memref<1x8x128xf32, #tpu.memory_space<vmem>>, vector<1x1x128xf32>,
    return
  }
  func.func @transform_0(%arg0: i32) -> (i32, i32, i32, i32) {
    %c0_i32 = arith.constant 0 : i32
    %c0_i32_0 = arith.constant 0 : i32
    %c0_i32_1 = arith.constant 0 : i32
    %c0_i32_2 = arith.constant 0 : i32
    return %arg0, %c0_i32, %c0_i32_0, %c0_i32_1 : i32, i32, i32, i32
  }
  func.func @transform_1(%arg0: i32) -> (i32, i32, i32) {
    %c0_i32 = arith.constant 0 : i32
    %c0_i32_0 = arith.constant 0 : i32
    %c0_i32_1 = arith.constant 0 : i32
    %c0_i32_2 = arith.constant 0 : i32
    return %c0_i32, %c0_i32_0, %c0_i32_1 : i32, i32, i32
  }
  func.func @transform_2(%arg0: i32) -> (i32, i32) {
    %c0_i32 = arith.constant 0 : i32
    %c0_i32_0 = arith.constant 0 : i32
    %c0_i32_1 = arith.constant 0 : i32
    return %c0_i32, %c0_i32_0 : i32, i32
  }
  func.func @transform_3(%arg0: i32) -> (i32, i32) {
    %c0_i32 = arith.constant 0 : i32
    %c0_i32_0 = arith.constant 0 : i32
    %c0_i32_1 = arith.constant 0 : i32
    return %c0_i32, %c0_i32_0 : i32, i32
  }
  func.func @transform_4(%arg0: i32) -> (i32, i32, i32) {
    %c0_i32 = arith.constant 0 : i32
    %c0_i32_0 = arith.constant 0 : i32
    %c0_i32_1 = arith.constant 0 : i32
    %c0_i32_2 = arith.constant 0 : i32
    return %c0_i32, %c0_i32_0, %c0_i32_1 : i32, i32, i32
  }
  func.func @transform_5(%arg0: i32) -> (i32, i32) {
    %c0_i32 = arith.constant 0 : i32
    %c0_i32_0 = arith.constant 0 : i32
    %c0_i32_1 = arith.constant 0 : i32
    return %c0_i32, %c0_i32_0 : i32, i32
  }
  func.func @transform_6(%arg0: i32) -> (i32, i32) {
    %c0_i32 = arith.constant 0 : i32
    %c0_i32_0 = arith.constant 0 : i32
    %c0_i32_1 = arith.constant 0 : i32
    return %c0_i32, %c0_i32_0 : i32, i32
  }
  func.func @transform_7(%arg0: i32) -> (i32, i32, i32) {
    %c0_i32 = arith.constant 0 : i32
    %c0_i32_0 = arith.constant 0 : i32
    %c0_i32_1 = arith.constant 0 : i32
    %c0_i32_2 = arith.constant 0 : i32
    return %c0_i32, %c0_i32_0, %c0_i32_1 : i32, i32, i32
  }
  func.func @transform_8(%arg0: i32) -> (i32, i32) {
    %c0_i32 = arith.constant 0 : i32
    %c0_i32_0 = arith.constant 0 : i32
    %c0_i32_1 = arith.constant 0 : i32
    return %c0_i32, %c0_i32_0 : i32, i32
  }
  func.func @transform_9(%arg0: i32) -> (i32, i32) {
    %c0_i32 = arith.constant 0 : i32
    %c0_i32_0 = arith.constant 0 : i32
    %c0_i32_1 = arith.constant 0 : i32
    return %c0_i32, %c0_i32_0 : i32, i32
  }
  func.func @transform_10(%arg0: i32) -> (i32, i32, i32) {
    %c0_i32 = arith.constant 0 : i32
    %c0_i32_0 = arith.constant 0 : i32
    %c0_i32_1 = arith.constant 0 : i32
    %c0_i32_2 = arith.constant 0 : i32
    return %c0_i32, %c0_i32_0, %c0_i32_1 : i32, i32, i32
  }
  func.func @transform_11(%arg0: i32) -> (i32, i32) {
    %c0_i32 = arith.constant 0 : i32
    %c0_i32_0 = arith.constant 0 : i32
    %c0_i32_1 = arith.constant 0 : i32
    return %c0_i32, %c0_i32_0 : i32, i32
  }
  func.func @transform_12(%arg0: i32) -> (i32, i32, i32) {
    %c0_i32 = arith.constant 0 : i32
    %c0_i32_0 = arith.constant 0 : i32
    %c0_i32_1 = arith.constant 0 : i32
    return %arg0, %c0_i32, %c0_i32_0 : i32, i32, i32
  }
}

</mosaic_0001>

<llo_original>
// kernel: tile.43
$region0: #{tile.43}
  #allocation0 [shape = 's32[1]{0}', space=sflag, size = 0x4, scoped, tag = 'scoped memory for tile.43']
  %s0 = inlined_call_operand.vmem [shape: f32[32], index: 0, kind: input, shape index: {}]
  %s1 = inlined_call_operand.vmem [shape: f32[6,32], index: 1, kind: output, shape index: {}]
  // Predicated region
  $region2: #{tile.43} parent=0 // pred_check
    _
  $region3: #{tile.43} parent=0 // pred_check_branch
    %3 = sbr.rel (0) target = $region5
  $region4: #{tile.43} parent=0 // pred_region
    _
  $region5: #{tile.43} parent=0 // pred_fallthru
    _
  %v4 = vld [vmem:[%s0] ss:$0 sm:$0xff]
  %5 = vst [vmem:[%s1] sm:$0xff] %v4

// kernel: tile.44
$region0: #{tile.44}
  %s0 = inlined_call_operand.vmem [shape: f32[6,32], index: 0, kind: input, shape index: {}]
  %s1 = inlined_call_operand.vmem [shape: f32[1,192], index: 1, kind: output, shape index: {}]
  $region1: #{tile.44} parent=0
    #allocation0 [shape = 'u8[8192]{0}', space=vmem, size = 0x2000, scoped, tag = 'scoped mem for output reshape']
    %s2 = smov 3
    %v3 = vld [vmem:[%s0] ss:$4 sm:%s2]
    %vm4 = vcmask 261120
    %5 = vst.msk [vmem:[#allocation0] ss:$8 sm:$0x3] %vm4, %v3
    %s6 = scalar_lea.vmem %s0, 3
    %v7 = vld [vmem:[%s6] sm:$0x1]
    %8 = vrot.lane.b32.xlu0 %v7, 96
    %v9 = vpop.permute.xlu0 %8
    %vm10 = vcmask 1048320
    %11 = vst.msk [vmem:[#allocation0] sm:$0x1] %vm10, %v9
    %s12 = scalar_lea.vmem %s0, 2
    %v13 = vld [vmem:[%s12] sm:$0x1]
    %14 = vrot.lane.b32.xlu0 %v13, 64
    %v15 = vpop.permute.xlu0 %14
    %vm16 = vcmask 785920
    %17 = vst.msk [vmem:[#allocation0] sm:$0x1] %vm16, %v15
    %s18 = scalar_lea.vmem %s0, 1
    %s19 = smov 3
    %v20 = vld [vmem:[%s18] ss:$4 sm:%s19]
    %21 = vrot.lane.b32.xlu0 %v20, 32
    %v22 = vpop.permute.xlu0 %21
    %vm23 = vcmask 523520
    %24 = vst.msk [vmem:[#allocation0] ss:$8 sm:$0x3] %vm23, %v22
    %s26 = sshllo.u32 0, 1
    %v28 = vld [vmem:[#allocation0] sm:%s26]
    %s29 = sshllo.u32 0, 1
    %30 = vst [vmem:[%s1] sm:%s29] %v28
    %s31 = scalar_lea.vmem [#allocation0], 8
    %v32 = vld [vmem:[%s31] sm:%s26]
    %s33 = sshllo.u32 0, 1
    %s34 = scalar_lea.vmem %s1, 1
    %35 = vst [vmem:[%s34] sm:%s33] %v32

// kernel: tile.53
$region0: #{tile.53}
  #allocation0 [shape = 's32[1]{0}', space=sflag, size = 0x4, scoped, tag = 'scoped memory for tile.53']
  %s0 = inlined_call_operand.vmem [shape: f32[32], index: 0, kind: input, shape index: {}]
  %s1 = inlined_call_operand.vmem [shape: f32[5,32], index: 1, kind: output, shape index: {}]
  // Predicated region
  $region2: #{tile.53} parent=0 // pred_check
    _
  $region3: #{tile.53} parent=0 // pred_check_branch
    %3 = sbr.rel (0) target = $region5
  $region4: #{tile.53} parent=0 // pred_region
    _
  $region5: #{tile.53} parent=0 // pred_fallthru
    _
  %v4 = vld [vmem:[%s0] ss:$0 sm:$0xff]
  %5 = vst [vmem:[%s1] sm:$0xff] %v4

// kernel: tile.54
$region0: #{tile.54}
  %s0 = inlined_call_operand.vmem [shape: f32[5,32], index: 0, kind: input, shape index: {}]
  %s1 = inlined_call_operand.vmem [shape: f32[1,160], index: 1, kind: output, shape index: {}]
  $region1: #{tile.54} parent=0
    #allocation0 [shape = 'u8[8192]{0}', space=vmem, size = 0x2000, scoped, tag = 'scoped mem for output reshape']
    %s2 = smov 3
    %v3 = vld [vmem:[%s0] ss:$4 sm:%s2]
    %vm4 = vcmask 261120
    %5 = vst.msk [vmem:[#allocation0] ss:$8 sm:$0x3] %vm4, %v3
    %s6 = scalar_lea.vmem %s0, 3
    %v7 = vld [vmem:[%s6] sm:$0x1]
    %8 = vrot.lane.b32.xlu0 %v7, 96
    %v9 = vpop.permute.xlu0 %8
    %vm10 = vcmask 1048320
    %11 = vst.msk [vmem:[#allocation0] sm:$0x1] %vm10, %v9
    %s12 = scalar_lea.vmem %s0, 2
    %v13 = vld [vmem:[%s12] sm:$0x1]
    %14 = vrot.lane.b32.xlu0 %v13, 64
    %v15 = vpop.permute.xlu0 %14
    %vm16 = vcmask 785920
    %17 = vst.msk [vmem:[#allocation0] sm:$0x1] %vm16, %v15
    %s18 = scalar_lea.vmem %s0, 1
    %v19 = vld [vmem:[%s18] sm:$0x1]
    %20 = vrot.lane.b32.xlu0 %v19, 32
    %v21 = vpop.permute.xlu0 %20
    %vm22 = vcmask 523520
    %23 = vst.msk [vmem:[#allocation0] sm:$0x1] %vm22, %v21
    %s25 = sshllo.u32 0, 1
    %v27 = vld [vmem:[#allocation0] sm:%s25]
    %s28 = sshllo.u32 0, 1
    %29 = vst [vmem:[%s1] sm:%s28] %v27
    %s30 = scalar_lea.vmem [#allocation0], 8
    %v31 = vld [vmem:[%s30] sm:%s25]
    %s32 = sshllo.u32 0, 1
    %s33 = scalar_lea.vmem %s1, 1
    %34 = vst [vmem:[%s33] sm:%s32] %v31

// kernel: tile.33
$region0: #{tile.33}
  #allocation0 [shape = 's32[1]{0}', space=sflag, size = 0x4, scoped, tag = 'scoped memory for tile.33']
  %s0 = inlined_call_operand.vmem [shape: f32[16], index: 0, kind: input, shape index: {}]
  %s1 = inlined_call_operand.vmem [shape: f32[7,16], index: 1, kind: output, shape index: {}]
  // Predicated region
  $region2: #{tile.33} parent=0 // pred_check
    _
  $region3: #{tile.33} parent=0 // pred_check_branch
    %3 = sbr.rel (0) target = $region5
  $region4: #{tile.33} parent=0 // pred_region
    _
  $region5: #{tile.33} parent=0 // pred_fallthru
    _
  %v4 = vld [vmem:[%s0] ss:$0 sm:$0xff]
  %5 = vst [vmem:[%s1] sm:$0xff] %v4

// kernel: tile.34
$region0: #{tile.34}
  %s0 = inlined_call_operand.vmem [shape: f32[7,16], index: 0, kind: input, shape index: {}]
  %s1 = inlined_call_operand.vmem [shape: f32[1,112], index: 1, kind: output, shape index: {}]
  $region1: #{tile.34} parent=0
    #allocation0 [shape = 'u8[4096]{0}', space=vmem, size = 0x1000, scoped, tag = 'scoped mem for output reshape']
    %v2 = vld [vmem:[%s0] sm:$0x1]
    %vm3 = vcmask 130048
    %4 = vst.msk [vmem:[#allocation0] sm:$0x1] %vm3, %v2
    %s5 = scalar_lea.vmem %s0, 6
    %v6 = vld [vmem:[%s5] sm:$0x1]
    %7 = vrot.lane.b32.xlu0 %v6, 96
    %v8 = vpop.permute.xlu0 %7
    %vm9 = vcmask 917248
    %10 = vst.msk [vmem:[#allocation0] sm:$0x1] %vm9, %v8
    %s11 = scalar_lea.vmem %s0, 5
    %v12 = vld [vmem:[%s11] sm:$0x1]
    %13 = vrot.lane.b32.xlu0 %v12, 80
    %v14 = vpop.permute.xlu0 %13
    %vm15 = vcmask 786048
    %16 = vst.msk [vmem:[#allocation0] sm:$0x1] %vm15, %v14
    %s17 = scalar_lea.vmem %s0, 4
    %v18 = vld [vmem:[%s17] sm:$0x1]
    %19 = vrot.lane.b32.xlu0 %v18, 64
    %v20 = vpop.permute.xlu0 %19
    %vm21 = vcmask 654848
    %22 = vst.msk [vmem:[#allocation0] sm:$0x1] %vm21, %v20
    %s23 = scalar_lea.vmem %s0, 3
    %v24 = vld [vmem:[%s23] sm:$0x1]
    %25 = vrot.lane.b32.xlu0 %v24, 48
    %v26 = vpop.permute.xlu0 %25
    %vm27 = vcmask 523648
    %28 = vst.msk [vmem:[#allocation0] sm:$0x1] %vm27, %v26
    %s29 = scalar_lea.vmem %s0, 2
    %v30 = vld [vmem:[%s29] sm:$0x1]
    %31 = vrot.lane.b32.xlu0 %v30, 32
    %v32 = vpop.permute.xlu0 %31
    %vm33 = vcmask 392448
    %34 = vst.msk [vmem:[#allocation0] sm:$0x1] %vm33, %v32
    %s35 = scalar_lea.vmem %s0, 1
    %v36 = vld [vmem:[%s35] sm:$0x1]
    %37 = vrot.lane.b32.xlu0 %v36, 16
    %v38 = vpop.permute.xlu0 %37
    %vm39 = vcmask 261248
    %40 = vst.msk [vmem:[#allocation0] sm:$0x1] %vm39, %v38
    %s42 = sshllo.u32 0, 1
    %v44 = vld [vmem:[#allocation0] sm:%s42]
    %s45 = sshllo.u32 0, 1
    %46 = vst [vmem:[%s1] sm:%s45] %v44

// kernel: dqn_forward.1
$region0: #{dqn_forward.1}
  #allocation0 [shape = 'u32[]', space=smem, size = 0x4, offset = 0x4, fixed_abs, tag = 'smem constant byte address 0x4 - core index']
  #allocation1 [shape = 'u32[144,128]{1,0:T(1,128)}', space=vmem, size = 0x12000, scoped, tag = 'internal scratch']
  #allocation2 [shape = 'f32[16,128]{1,0:T(8,128)}', space=vmem, size = 0x2000, scoped, tag = 'scratch operand']
  #allocation3 [shape = 'f32[16,256]{1,0:T(8,128)}', space=vmem, size = 0x4000, scoped, tag = 'scratch operand']
  #allocation4 [shape = 'f32[16,256]{1,0:T(8,128)}', space=vmem, size = 0x4000, scoped, tag = 'scratch operand']
  %s0 = inlined_call_operand.vmem [shape: f32[2,2,16,128], index: 0, kind: input, shape index: {}]
  %s1 = inlined_call_operand.vmem [shape: bf16[4,128,128], index: 1, kind: input, shape index: {}]
  %s2 = inlined_call_operand.vmem [shape: f32[1,128], index: 2, kind: input, shape index: {}]
  %s3 = inlined_call_operand.vmem [shape: f32[1,128], index: 3, kind: input, shape index: {}]
  %s4 = inlined_call_operand.vmem [shape: bf16[2,128,256], index: 4, kind: input, shape index: {}]
  %s5 = inlined_call_operand.vmem [shape: f32[1,256], index: 5, kind: input, shape index: {}]
  %s6 = inlined_call_operand.vmem [shape: f32[1,256], index: 6, kind: input, shape index: {}]
  %s7 = inlined_call_operand.vmem [shape: bf16[2,256,256], index: 7, kind: input, shape index: {}]
  %s8 = inlined_call_operand.vmem [shape: f32[1,256], index: 8, kind: input, shape index: {}]
  %s9 = inlined_call_operand.vmem [shape: f32[1,256], index: 9, kind: input, shape index: {}]
  %s10 = inlined_call_operand.vmem [shape: f32[5,256,128], index: 10, kind: input, shape index: {}]
  %s11 = inlined_call_operand.vmem [shape: f32[1,128], index: 11, kind: input, shape index: {}]
  %s12 = inlined_call_operand.vmem [shape: f32[2,8,128], index: 12, kind: output, shape index: {}]
  %s13 = sld [smem:[#allocation0]]
  $region81: #{dqn_forward.1} parent=0
    _
  %s15 = ssub.s32 1, %s13
  %s16 = scalar_select 0, %s15, %s13
  loop: start=0, step=1, limit=4
  $region2: #{dqn_forward.1} parent=0 // loop_pre_header
    _
  $region3: #{dqn_forward.1} parent=0 // loop_header
    %s18 = sphi 0, %s22
    %p19 = scmp.ge.s32.totalorder %s18, 4
    %s28 = sphi 0, %s30
    %s31 = sphi 0, %s28
    %s32 = sphi 0, %s31
    %s48 = sphi 0, %s32
    %s52 = sphi 0, %s52
    %s54 = sphi 0, %s52
    %s55 = sphi 0, %s54
    %s69 = sphi 0, %s55
    %s73 = sphi 0, %s73
    %s75 = sphi 0, %s73
    %s76 = sphi 0, %s75
    %s90 = sphi 0, %s76
    %s94 = sphi 0, %s94
    %s96 = sphi 0, %s94
    %s97 = sphi 0, %s96
    %s111 = sphi 0, %s97
    %s115 = sphi 0, %s115
    %s117 = sphi 0, %s115
    %s118 = sphi 0, %s117
    %s132 = sphi 0, %s118
    %s136 = sphi 0, %s136
    %s138 = sphi 0, %s136
    %s139 = sphi 0, %s138
    %s153 = sphi 0, %s139
    %s157 = sphi 0, %s157
    %s159 = sphi 0, %s157
    %s160 = sphi 0, %s159
    %s174 = sphi 0, %s160
    %s178 = sphi 0, %s178
    %s180 = sphi 0, %s178
    %s181 = sphi 0, %s180
    %s195 = sphi 0, %s181
    %s199 = sphi 0, %s199
    %s201 = sphi 0, %s199
    %s202 = sphi 0, %s201
    %s216 = sphi 0, %s202
    %s220 = sphi 0, %s220
    %s222 = sphi 0, %s220
    %s223 = sphi 0, %s222
    %s237 = sphi 0, %s223
    %s241 = sphi 0, %s241
    %s243 = sphi 0, %s241
    %s244 = sphi 0, %s243
    %s258 = sphi 0, %s244
    %s262 = sphi 0, %s262
    %s264 = sphi 0, %s262
    %s265 = sphi 0, %s264
    %s279 = sphi 0, %s265
    %s285 = sphi 0, %s287
    %s288 = sphi 0, %s285
    %s289 = sphi 0, %s288
    %s305 = sphi 0, %s289
  $region4: #{dqn_forward.1} parent=0 // loop_header_branch
    %21 = sbr.rel (%p19) target = $region8
  $region5: #{dqn_forward.1} parent=0 // loop_body
    %s23 = ssub.s32 %s18, 1
    %s24 = ssub.s32 %s18, 2
    %s25 = sadd.s32 %s18, 1
    %s26 = ssub.s32 %s18, %s25
    %p27 = scmp.eq.s32.totalorder %s26, 0
    %s29 = sadd.s32 %s28, 1
    %s30 = scalar_select %p27, %s28, %s29
    %p33 = pneg %p27
    %p34 = scmp.eq.s32.totalorder %s18, 1
    %p35 = por %p33, %p34
    %p36 = scmp.ne.s32.totalorder %s28, %s31
    %p37 = scmp.eq.s32.totalorder %s18, 0
    %p38 = por %p36, %p37
    %p39 = scmp.ne.s32.totalorder %s28, %s31
    %p40 = scmp.eq.s32.totalorder %s23, 1
    %p41 = por %p39, %p40
    %p42 = scmp.ne.s32.totalorder %s31, %s32
    %p43 = scmp.eq.s32.totalorder %s23, 0
    %p44 = por %p42, %p43
    %p45 = scmp.ne.s32.totalorder %s31, %s32
    %p46 = scmp.eq.s32.totalorder %s24, 1
    %p47 = por %p45, %p46
    %p49 = scmp.ne.s32.totalorder %s32, %s48
    %p50 = scmp.eq.s32.totalorder %s24, 0
    %p51 = por %p49, %p50
    %s53 = sadd.s32 %s52, 1
    %p56 = scmp.eq.s32.totalorder %s18, 1
    %p57 = scmp.ne.s32.totalorder %s52, %s54
    %p58 = scmp.eq.s32.totalorder %s18, 0
    %p59 = por %p57, %p58
    %p60 = scmp.ne.s32.totalorder %s52, %s54
    %p61 = scmp.eq.s32.totalorder %s23, 1
    %p62 = por %p60, %p61
    %p63 = scmp.ne.s32.totalorder %s54, %s55
    %p64 = scmp.eq.s32.totalorder %s23, 0
    %p65 = por %p63, %p64
    %p66 = scmp.ne.s32.totalorder %s54, %s55
    %p67 = scmp.eq.s32.totalorder %s24, 1
    %p68 = por %p66, %p67
    %p70 = scmp.ne.s32.totalorder %s55, %s69
    %p71 = scmp.eq.s32.totalorder %s24, 0
    %p72 = por %p70, %p71
    %s74 = sadd.s32 %s73, 1
    %p77 = scmp.eq.s32.totalorder %s18, 1
    %p78 = scmp.ne.s32.totalorder %s73, %s75
    %p79 = scmp.eq.s32.totalorder %s18, 0
    %p80 = por %p78, %p79
    %p81 = scmp.ne.s32.totalorder %s73, %s75
    %p82 = scmp.eq.s32.totalorder %s23, 1
    %p83 = por %p81, %p82
    %p84 = scmp.ne.s32.totalorder %s75, %s76
    %p85 = scmp.eq.s32.totalorder %s23, 0
    %p86 = por %p84, %p85
    %p87 = scmp.ne.s32.totalorder %s75, %s76
    %p88 = scmp.eq.s32.totalorder %s24, 1
    %p89 = por %p87, %p88
    %p91 = scmp.ne.s32.totalorder %s76, %s90
    %p92 = scmp.eq.s32.totalorder %s24, 0
    %p93 = por %p91, %p92
    %s95 = sadd.s32 %s94, 1
    %p98 = scmp.eq.s32.totalorder %s18, 1
    %p99 = scmp.ne.s32.totalorder %s94, %s96
    %p100 = scmp.eq.s32.totalorder %s18, 0
    %p101 = por %p99, %p100
    %p102 = scmp.ne.s32.totalorder %s94, %s96
    %p103 = scmp.eq.s32.totalorder %s23, 1
    %p104 = por %p102, %p103
    %p105 = scmp.ne.s32.totalorder %s96, %s97
    %p106 = scmp.eq.s32.totalorder %s23, 0
    %p107 = por %p105, %p106
    %p108 = scmp.ne.s32.totalorder %s96, %s97
    %p109 = scmp.eq.s32.totalorder %s24, 1
    %p110 = por %p108, %p109
    %p112 = scmp.ne.s32.totalorder %s97, %s111
    %p113 = scmp.eq.s32.totalorder %s24, 0
    %p114 = por %p112, %p113
    %s116 = sadd.s32 %s115, 1
    %p119 = scmp.eq.s32.totalorder %s18, 1
    %p120 = scmp.ne.s32.totalorder %s115, %s117
    %p121 = scmp.eq.s32.totalorder %s18, 0
    %p122 = por %p120, %p121
    %p123 = scmp.ne.s32.totalorder %s115, %s117
    %p124 = scmp.eq.s32.totalorder %s23, 1
    %p125 = por %p123, %p124
    %p126 = scmp.ne.s32.totalorder %s117, %s118
    %p127 = scmp.eq.s32.totalorder %s23, 0
    %p128 = por %p126, %p127
    %p129 = scmp.ne.s32.totalorder %s117, %s118
    %p130 = scmp.eq.s32.totalorder %s24, 1
    %p131 = por %p129, %p130
    %p133 = scmp.ne.s32.totalorder %s118, %s132
    %p134 = scmp.eq.s32.totalorder %s24, 0
    %p135 = por %p133, %p134
    %s137 = sadd.s32 %s136, 1
    %p140 = scmp.eq.s32.totalorder %s18, 1
    %p141 = scmp.ne.s32.totalorder %s136, %s138
    %p142 = scmp.eq.s32.totalorder %s18, 0
    %p143 = por %p141, %p142
    %p144 = scmp.ne.s32.totalorder %s136, %s138
    %p145 = scmp.eq.s32.totalorder %s23, 1
    %p146 = por %p144, %p145
    %p147 = scmp.ne.s32.totalorder %s138, %s139
    %p148 = scmp.eq.s32.totalorder %s23, 0
    %p149 = por %p147, %p148
    %p150 = scmp.ne.s32.totalorder %s138, %s139
    %p151 = scmp.eq.s32.totalorder %s24, 1
    %p152 = por %p150, %p151
    %p154 = scmp.ne.s32.totalorder %s139, %s153
    %p155 = scmp.eq.s32.totalorder %s24, 0
    %p156 = por %p154, %p155
    %s158 = sadd.s32 %s157, 1
    %p161 = scmp.eq.s32.totalorder %s18, 1
    %p162 = scmp.ne.s32.totalorder %s157, %s159
    %p163 = scmp.eq.s32.totalorder %s18, 0
    %p164 = por %p162, %p163
    %p165 = scmp.ne.s32.totalorder %s157, %s159
    %p166 = scmp.eq.s32.totalorder %s23, 1
    %p167 = por %p165, %p166
    %p168 = scmp.ne.s32.totalorder %s159, %s160
    %p169 = scmp.eq.s32.totalorder %s23, 0
    %p170 = por %p168, %p169
    %p171 = scmp.ne.s32.totalorder %s159, %s160
    %p172 = scmp.eq.s32.totalorder %s24, 1
    %p173 = por %p171, %p172
    %p175 = scmp.ne.s32.totalorder %s160, %s174
    %p176 = scmp.eq.s32.totalorder %s24, 0
    %p177 = por %p175, %p176
    %s179 = sadd.s32 %s178, 1
    %p182 = scmp.eq.s32.totalorder %s18, 1
    %p183 = scmp.ne.s32.totalorder %s178, %s180
    %p184 = scmp.eq.s32.totalorder %s18, 0
    %p185 = por %p183, %p184
    %p186 = scmp.ne.s32.totalorder %s178, %s180
    %p187 = scmp.eq.s32.totalorder %s23, 1
    %p188 = por %p186, %p187
    %p189 = scmp.ne.s32.totalorder %s180, %s181
    %p190 = scmp.eq.s32.totalorder %s23, 0
    %p191 = por %p189, %p190
    %p192 = scmp.ne.s32.totalorder %s180, %s181
    %p193 = scmp.eq.s32.totalorder %s24, 1
    %p194 = por %p192, %p193
    %p196 = scmp.ne.s32.totalorder %s181, %s195
    %p197 = scmp.eq.s32.totalorder %s24, 0
    %p198 = por %p196, %p197
    %s200 = sadd.s32 %s199, 1
    %p203 = scmp.eq.s32.totalorder %s18, 1
    %p204 = scmp.ne.s32.totalorder %s199, %s201
    %p205 = scmp.eq.s32.totalorder %s18, 0
    %p206 = por %p204, %p205
    %p207 = scmp.ne.s32.totalorder %s199, %s201
    %p208 = scmp.eq.s32.totalorder %s23, 1
    %p209 = por %p207, %p208
    %p210 = scmp.ne.s32.totalorder %s201, %s202
    %p211 = scmp.eq.s32.totalorder %s23, 0
    %p212 = por %p210, %p211
    %p213 = scmp.ne.s32.totalorder %s201, %s202
    %p214 = scmp.eq.s32.totalorder %s24, 1
    %p215 = por %p213, %p214
    %p217 = scmp.ne.s32.totalorder %s202, %s216
    %p218 = scmp.eq.s32.totalorder %s24, 0
    %p219 = por %p217, %p218
    %s221 = sadd.s32 %s220, 1
    %p224 = scmp.eq.s32.totalorder %s18, 1
    %p225 = scmp.ne.s32.totalorder %s220, %s222
    %p226 = scmp.eq.s32.totalorder %s18, 0
    %p227 = por %p225, %p226
    %p228 = scmp.ne.s32.totalorder %s220, %s222
    %p229 = scmp.eq.s32.totalorder %s23, 1
    %p230 = por %p228, %p229
    %p231 = scmp.ne.s32.totalorder %s222, %s223
    %p232 = scmp.eq.s32.totalorder %s23, 0
    %p233 = por %p231, %p232
    %p234 = scmp.ne.s32.totalorder %s222, %s223
    %p235 = scmp.eq.s32.totalorder %s24, 1
    %p236 = por %p234, %p235
    %p238 = scmp.ne.s32.totalorder %s223, %s237
    %p239 = scmp.eq.s32.totalorder %s24, 0
    %p240 = por %p238, %p239
    %s242 = sadd.s32 %s241, 1
    %p245 = scmp.eq.s32.totalorder %s18, 1
    %p246 = scmp.ne.s32.totalorder %s241, %s243
    %p247 = scmp.eq.s32.totalorder %s18, 0
    %p248 = por %p246, %p247
    %p249 = scmp.ne.s32.totalorder %s241, %s243
    %p250 = scmp.eq.s32.totalorder %s23, 1
    %p251 = por %p249, %p250
    %p252 = scmp.ne.s32.totalorder %s243, %s244
    %p253 = scmp.eq.s32.totalorder %s23, 0
    %p254 = por %p252, %p253
    %p255 = scmp.ne.s32.totalorder %s243, %s244
    %p256 = scmp.eq.s32.totalorder %s24, 1
    %p257 = por %p255, %p256
    %p259 = scmp.ne.s32.totalorder %s244, %s258
    %p260 = scmp.eq.s32.totalorder %s24, 0
    %p261 = por %p259, %p260
    %s263 = sadd.s32 %s262, 1
    %p266 = scmp.eq.s32.totalorder %s18, 1
    %p267 = scmp.ne.s32.totalorder %s262, %s264
    %p268 = scmp.eq.s32.totalorder %s18, 0
    %p269 = por %p267, %p268
    %p270 = scmp.ne.s32.totalorder %s262, %s264
    %p271 = scmp.eq.s32.totalorder %s23, 1
    %p272 = por %p270, %p271
    %p273 = scmp.ne.s32.totalorder %s264, %s265
    %p274 = scmp.eq.s32.totalorder %s23, 0
    %p275 = por %p273, %p274
    %p276 = scmp.ne.s32.totalorder %s264, %s265
    %p277 = scmp.eq.s32.totalorder %s24, 1
    %p278 = por %p276, %p277
    %p280 = scmp.ne.s32.totalorder %s265, %s279
    %p281 = scmp.eq.s32.totalorder %s24, 0
    %p282 = por %p280, %p281
    %s283 = ssub.s32 %s18, %s25
    %p284 = scmp.eq.s32.totalorder %s283, 0
    %s286 = sadd.s32 %s285, 1
    %s287 = scalar_select %p284, %s285, %s286
    %p290 = pneg %p284
    %p291 = scmp.eq.s32.totalorder %s18, 1
    %p292 = por %p290, %p291
    %p293 = scmp.ne.s32.totalorder %s285, %s288
    %p294 = scmp.eq.s32.totalorder %s18, 0
    %p295 = por %p293, %p294
    %p296 = scmp.ne.s32.totalorder %s285, %s288
    %p297 = scmp.eq.s32.totalorder %s23, 1
    %p298 = por %p296, %p297
    %p299 = scmp.ne.s32.totalorder %s288, %s289
    %p300 = scmp.eq.s32.totalorder %s23, 0
    %p301 = por %p299, %p300
    %p302 = scmp.ne.s32.totalorder %s288, %s289
    %p303 = scmp.eq.s32.totalorder %s24, 1
    %p304 = por %p302, %p303
    %p306 = scmp.ne.s32.totalorder %s289, %s305
    %p307 = scmp.eq.s32.totalorder %s24, 0
    %p308 = por %p306, %p307
    %p309 = scmp.le.s32.totalorder 1, %s18
    %p310 = scmp.lt.s32.totalorder %s18, 3
    %p311 = pnand %p309, %p310
    %p312 = pneg %p311
    // Predicated region
    $region9: #{dqn_forward.1} parent=5 // pred_check
      _
    $region10: #{dqn_forward.1} parent=5 // pred_check_branch
      %314 = sbr.rel (%p311) target = $region12
    $region11: #{dqn_forward.1} parent=5 // pred_region
      %s315 = ssub.s32 %s18, 1
      // Predicated region
      $region13: #{dqn_forward.1} parent=11 // pred_check
        %p316 = pneg %p65
      $region14: #{dqn_forward.1} parent=11 // pred_check_branch
        %318 = sbr.rel (%p316) target = $region16
      $region15: #{dqn_forward.1} parent=11 // pred_region
        _
      $region16: #{dqn_forward.1} parent=11 // pred_fallthru
        _
      // Predicated region
      $region17: #{dqn_forward.1} parent=11 // pred_check
        %p319 = pneg %p86
      $region18: #{dqn_forward.1} parent=11 // pred_check_branch
        %321 = sbr.rel (%p319) target = $region20
      $region19: #{dqn_forward.1} parent=11 // pred_region
        _
      $region20: #{dqn_forward.1} parent=11 // pred_fallthru
        _
      // Predicated region
      $region21: #{dqn_forward.1} parent=11 // pred_check
        %p322 = pneg %p107
      $region22: #{dqn_forward.1} parent=11 // pred_check_branch
        %324 = sbr.rel (%p322) target = $region24
      $region23: #{dqn_forward.1} parent=11 // pred_region
        _
      $region24: #{dqn_forward.1} parent=11 // pred_fallthru
        _
      // Predicated region
      $region25: #{dqn_forward.1} parent=11 // pred_check
        %p325 = pneg %p128
      $region26: #{dqn_forward.1} parent=11 // pred_check_branch
        %327 = sbr.rel (%p325) target = $region28
      $region27: #{dqn_forward.1} parent=11 // pred_region
        _
      $region28: #{dqn_forward.1} parent=11 // pred_fallthru
        _
      // Predicated region
      $region29: #{dqn_forward.1} parent=11 // pred_check
        %p328 = pneg %p149
      $region30: #{dqn_forward.1} parent=11 // pred_check_branch
        %330 = sbr.rel (%p328) target = $region32
      $region31: #{dqn_forward.1} parent=11 // pred_region
        _
      $region32: #{dqn_forward.1} parent=11 // pred_fallthru
        _
      // Predicated region
      $region33: #{dqn_forward.1} parent=11 // pred_check
        %p331 = pneg %p170
      $region34: #{dqn_forward.1} parent=11 // pred_check_branch
        %333 = sbr.rel (%p331) target = $region36
      $region35: #{dqn_forward.1} parent=11 // pred_region
        _
      $region36: #{dqn_forward.1} parent=11 // pred_fallthru
        _
      // Predicated region
      $region37: #{dqn_forward.1} parent=11 // pred_check
        %p334 = pneg %p191
      $region38: #{dqn_forward.1} parent=11 // pred_check_branch
        %336 = sbr.rel (%p334) target = $region40
      $region39: #{dqn_forward.1} parent=11 // pred_region
        _
      $region40: #{dqn_forward.1} parent=11 // pred_fallthru
        _
      // Predicated region
      $region41: #{dqn_forward.1} parent=11 // pred_check
        %p337 = pneg %p212
      $region42: #{dqn_forward.1} parent=11 // pred_check_branch
        %339 = sbr.rel (%p337) target = $region44
      $region43: #{dqn_forward.1} parent=11 // pred_region
        _
      $region44: #{dqn_forward.1} parent=11 // pred_fallthru
        _
      // Predicated region
      $region45: #{dqn_forward.1} parent=11 // pred_check
        %p340 = pneg %p233
      $region46: #{dqn_forward.1} parent=11 // pred_check_branch
        %342 = sbr.rel (%p340) target = $region48
      $region47: #{dqn_forward.1} parent=11 // pred_region
        _
      $region48: #{dqn_forward.1} parent=11 // pred_fallthru
        _
      // Predicated region
      $region49: #{dqn_forward.1} parent=11 // pred_check
        %p343 = pneg %p254
      $region50: #{dqn_forward.1} parent=11 // pred_check_branch
        %345 = sbr.rel (%p343) target = $region52
      $region51: #{dqn_forward.1} parent=11 // pred_region
        _
      $region52: #{dqn_forward.1} parent=11 // pred_fallthru
        _
      // Predicated region
      $region53: #{dqn_forward.1} parent=11 // pred_check
        %p346 = pneg %p275
      $region54: #{dqn_forward.1} parent=11 // pred_check_branch
        %348 = sbr.rel (%p346) target = $region56
      $region55: #{dqn_forward.1} parent=11 // pred_region
        _
      $region56: #{dqn_forward.1} parent=11 // pred_fallthru
        _
    $region12: #{dqn_forward.1} parent=5 // pred_fallthru
      _
    %p349 = scmp.lt.s32.totalorder %s18, 2
    // Predicated region
    $region57: #{dqn_forward.1} parent=5 // pred_check
      %p350 = pneg %p349
    $region58: #{dqn_forward.1} parent=5 // pred_check_branch
      %352 = sbr.rel (%p350) target = $region60
    $region59: #{dqn_forward.1} parent=5 // pred_region
      // Predicated region
      $region61: #{dqn_forward.1} parent=59 // pred_check
        %p353 = pneg %p38
      $region62: #{dqn_forward.1} parent=59 // pred_check_branch
        %355 = sbr.rel (%p353) target = $region64
      $region63: #{dqn_forward.1} parent=59 // pred_region
        %p356 = scmp.lt.s32.totalorder %s18, 1
        %s357 = scalar_select %p356, %s18, 1
        %s358 = smul.addr %s357, 4
        %s359 = smul.addr %s358, 8
        %s360 = scalar_lea.vmem %s0, %s359
      $region64: #{dqn_forward.1} parent=59 // pred_fallthru
        _
    $region60: #{dqn_forward.1} parent=5 // pred_fallthru
      _
    %p361 = scmp.le.s32.totalorder 1, %s18
    %p362 = scmp.lt.s32.totalorder %s18, 3
    %p363 = pnand %p361, %p362
    %p364 = pneg %p363
    // Predicated region
    $region65: #{dqn_forward.1} parent=5 // pred_check
      _
    $region66: #{dqn_forward.1} parent=5 // pred_check_branch
      %366 = sbr.rel (%p363) target = $region68
    $region67: #{dqn_forward.1} parent=5 // pred_region
      %s367 = ssub.s32 %s18, 1
      %p368 = scmp.lt.s32.totalorder %s23, 1
      %s369 = scalar_select %p368, %s23, 1
      %s370 = smul.addr %s369, 4
      %s371 = smul.addr %s370, 8
      %s372 = scalar_lea.vmem %s0, %s371
      %p373 = pneg %p44
      %p374 = pneg %p41
      %p375 = pneg %p65
      %p376 = pneg %p62
      %p377 = pneg %p86
      %p378 = pneg %p83
      %p379 = pneg %p107
      %p380 = pneg %p104
      %p381 = pneg %p128
      %p382 = pneg %p125
      %p383 = pneg %p149
      %p384 = pneg %p146
      %p385 = pneg %p170
      %p386 = pneg %p167
      %p387 = pneg %p191
      %p388 = pneg %p188
      %p389 = pneg %p212
      %p390 = pneg %p209
      %p391 = pneg %p233
      %p392 = pneg %p230
      %p393 = pneg %p254
      %p394 = pneg %p251
      %p395 = pneg %p275
      %p396 = pneg %p272
      %p397 = pneg %p301
      %p398 = pneg %p298
      %p399 = scmp.lt.s32.totalorder %s23, 1
      %s400 = scalar_select %p399, %s23, 1
      %s401 = smul.addr %s400, 8
      %s402 = scalar_lea.vmem %s12, %s401
      %p403 = scmp.lt.s32.totalorder %s23, 1
      %s404 = scalar_select %p403, %s23, 1
      %s405 = smul.addr %s404, 4
      %s406 = smul.addr %s405, 8
      %s407 = scalar_lea.vmem %s0, %s406
      %p408 = scmp.lt.s32.totalorder %s23, 1
      %s409 = scalar_select %p408, %s23, 1
      %s410 = smul.addr %s409, 8
      %s411 = scalar_lea.vmem %s12, %s410
      %v413 = vld [vmem:[%s407] sm:$0xff]
      %v414 = vpack.c.bf16 %v413, %v413
      %v415 = vld [vmem:[%s1] sm:$0xf]
      %v416 = vld [vmem:[%s1 + $0x4] sm:$0xf]
      %v417 = vld [vmem:[%s1 + $0x8] sm:$0xf]
      %v418 = vld [vmem:[%s1 + $0xc] sm:$0xf]
      %v419 = vld [vmem:[%s1 + $0x10] sm:$0xf]
      %v420 = vld [vmem:[%s1 + $0x14] sm:$0xf]
      %v421 = vld [vmem:[%s1 + $0x18] sm:$0xf]
      %v422 = vld [vmem:[%s1 + $0x1c] sm:$0xf]
      %v423 = vld [vmem:[%s1 + $0x20] sm:$0xf]
      %v424 = vld [vmem:[%s1 + $0x24] sm:$0xf]
      %v425 = vld [vmem:[%s1 + $0x28] sm:$0xf]
      %v426 = vld [vmem:[%s1 + $0x2c] sm:$0xf]
      %v427 = vld [vmem:[%s1 + $0x30] sm:$0xf]
      %v428 = vld [vmem:[%s1 + $0x34] sm:$0xf]
      %v429 = vld [vmem:[%s1 + $0x38] sm:$0xf]
      %v430 = vld [vmem:[%s1 + $0x3c] sm:$0xf]
      %s431 = scalar_lea.vmem %s407, 16
      %v432 = vld [vmem:[%s431] sm:$0xff]
      %v433 = vpack.c.bf16 %v432, %v432
      %s434 = scalar_lea.vmem %s1, 64
      %v435 = vld [vmem:[%s434] sm:$0xf]
      %v436 = vld [vmem:[%s434 + $0x4] sm:$0xf]
      %v437 = vld [vmem:[%s434 + $0x8] sm:$0xf]
      %v438 = vld [vmem:[%s434 + $0xc] sm:$0xf]
      %v439 = vld [vmem:[%s434 + $0x10] sm:$0xf]
      %v440 = vld [vmem:[%s434 + $0x14] sm:$0xf]
      %v441 = vld [vmem:[%s434 + $0x18] sm:$0xf]
      %v442 = vld [vmem:[%s434 + $0x1c] sm:$0xf]
      %v443 = vld [vmem:[%s434 + $0x20] sm:$0xf]
      %v444 = vld [vmem:[%s434 + $0x24] sm:$0xf]
      %v445 = vld [vmem:[%s434 + $0x28] sm:$0xf]
      %v446 = vld [vmem:[%s434 + $0x2c] sm:$0xf]
      %v447 = vld [vmem:[%s434 + $0x30] sm:$0xf]
      %v448 = vld [vmem:[%s434 + $0x34] sm:$0xf]
      %v449 = vld [vmem:[%s434 + $0x38] sm:$0xf]
      %v450 = vld [vmem:[%s434 + $0x3c] sm:$0xf]
      %v467 = vunpack.c.l.b16 %v435
      %v468 = vunpack.c.l.b16 %v436
      %v469 = vunpack.c.l.b16 %v437
      %v470 = vunpack.c.l.b16 %v438
      %v471 = vunpack.c.l.b16 %v439
      %v472 = vunpack.c.l.b16 %v440
      %v473 = vunpack.c.l.b16 %v441
      %v474 = vunpack.c.l.b16 %v442
      %v475 = vunpack.c.l.b16 %v443
      %v476 = vunpack.c.l.b16 %v444
      %v477 = vunpack.c.l.b16 %v445
      %v478 = vunpack.c.l.b16 %v446
      %v479 = vunpack.c.l.b16 %v447
      %v480 = vunpack.c.l.b16 %v448
      %v481 = vunpack.c.l.b16 %v449
      %v482 = vunpack.c.l.b16 %v450
      %v483 = vpack.c.b16 %v468, %v467
      %v484 = vpack.c.b16 %v470, %v469
      %v485 = vpack.c.b16 %v472, %v471
      %v486 = vpack.c.b16 %v474, %v473
      %v487 = vpack.c.b16 %v476, %v475
      %v488 = vpack.c.b16 %v478, %v477
      %v489 = vpack.c.b16 %v480, %v479
      %v490 = vpack.c.b16 %v482, %v481
      %499 = vmatprep.subr.bf16.mxu0 0
      %500 = vmatpush1.bf16.msra.mxu0 %v483
      %501 = vmatprep.subr.bf16.mxu0 0
      %502 = vmatpush1.bf16.msra.mxu0 %v484
      %503 = vmatprep.subr.bf16.mxu0 0
      %504 = vmatpush1.bf16.msra.mxu0 %v485
      %505 = vmatprep.subr.bf16.mxu0 0
      %506 = vmatpush1.bf16.msra.mxu0 %v486
      %507 = vmatprep.subr.bf16.mxu0 0
      %508 = vmatpush1.bf16.msra.mxu0 %v487
      %509 = vmatprep.subr.bf16.mxu0 0
      %510 = vmatpush1.bf16.msra.mxu0 %v488
      %511 = vmatprep.subr.bf16.mxu0 0
      %512 = vmatpush1.bf16.msra.mxu0 %v489
      %513 = vmatprep.subr.bf16.mxu0 0
      %514 = vmatpush1.bf16.msra.mxu0 %v490
      %515 = vmatprep.subr.bf16.mxu0 0
      %516 = vmatpush1.bf16.msra.mxu0 0
      %517 = vmatprep.subr.bf16.mxu0 0
      %518 = vmatpush1.bf16.msra.mxu0 0
      %519 = vmatprep.subr.bf16.mxu0 0
      %520 = vmatpush1.bf16.msra.mxu0 0
      %521 = vmatprep.subr.bf16.mxu0 0
      %522 = vmatpush1.bf16.msra.mxu0 0
      %523 = vmatprep.subr.bf16.mxu0 0
      %524 = vmatpush1.bf16.msra.mxu0 0
      %525 = vmatprep.subr.bf16.mxu0 0
      %526 = vmatpush1.bf16.msra.mxu0 0
      %527 = vmatprep.subr.bf16.mxu0 0
      %528 = vmatpush1.bf16.msra.mxu0 0
      %529 = vmatprep.subr.bf16.mxu0 0
      %530 = vmatpush1.bf16.msra.mxu0 0
      %531 = vmatprep.mubr.bf16.mxu0 0
      %532 = vmatmul.mubr.bf16.gmra.mrb[0].mxu0 %v433
      %v533 = vpop.f32.mrb[0].mxu0
      %v534 = vadd.f32 0.0, %v533
      %v535 = vpop.f32.mrb[0].mxu0
      %v536 = vpop.f32.mrb[0].mxu0
      %v537 = vpop.f32.mrb[0].mxu0
      %538 = vdwg.mxu0
      %v555 = vunpack.c.l.b16 %v415
      %v556 = vunpack.c.l.b16 %v416
      %v557 = vunpack.c.l.b16 %v417
      %v558 = vunpack.c.l.b16 %v418
      %v559 = vunpack.c.l.b16 %v419
      %v560 = vunpack.c.l.b16 %v420
      %v561 = vunpack.c.l.b16 %v421
      %v562 = vunpack.c.l.b16 %v422
      %v563 = vunpack.c.l.b16 %v423
      %v564 = vunpack.c.l.b16 %v424
      %v565 = vunpack.c.l.b16 %v425
      %v566 = vunpack.c.l.b16 %v426
      %v567 = vunpack.c.l.b16 %v427
      %v568 = vunpack.c.l.b16 %v428
      %v569 = vunpack.c.l.b16 %v429
      %v570 = vunpack.c.l.b16 %v430
      %v571 = vpack.c.b16 %v556, %v555
      %v572 = vpack.c.b16 %v558, %v557
      %v573 = vpack.c.b16 %v560, %v559
      %v574 = vpack.c.b16 %v562, %v561
      %v575 = vpack.c.b16 %v564, %v563
      %v576 = vpack.c.b16 %v566, %v565
      %v577 = vpack.c.b16 %v568, %v567
      %v578 = vpack.c.b16 %v570, %v569
      %587 = vmatprep.subr.bf16.mxu0 0
      %588 = vmatpush1.bf16.msra.mxu0 %v571
      %589 = vmatprep.subr.bf16.mxu0 0
      %590 = vmatpush1.bf16.msra.mxu0 %v572
      %591 = vmatprep.subr.bf16.mxu0 0
      %592 = vmatpush1.bf16.msra.mxu0 %v573
      %593 = vmatprep.subr.bf16.mxu0 0
      %594 = vmatpush1.bf16.msra.mxu0 %v574
      %595 = vmatprep.subr.bf16.mxu0 0
      %596 = vmatpush1.bf16.msra.mxu0 %v575
      %597 = vmatprep.subr.bf16.mxu0 0
      %598 = vmatpush1.bf16.msra.mxu0 %v576
      %599 = vmatprep.subr.bf16.mxu0 0
      %600 = vmatpush1.bf16.msra.mxu0 %v577
      %601 = vmatprep.subr.bf16.mxu0 0
      %602 = vmatpush1.bf16.msra.mxu0 %v578
      %603 = vmatprep.subr.bf16.mxu0 0
      %604 = vmatpush1.bf16.msra.mxu0 0
      %605 = vmatprep.subr.bf16.mxu0 0
      %606 = vmatpush1.bf16.msra.mxu0 0
      %607 = vmatprep.subr.bf16.mxu0 0
      %608 = vmatpush1.bf16.msra.mxu0 0
      %609 = vmatprep.subr.bf16.mxu0 0
      %610 = vmatpush1.bf16.msra.mxu0 0
      %611 = vmatprep.subr.bf16.mxu0 0
      %612 = vmatpush1.bf16.msra.mxu0 0
      %613 = vmatprep.subr.bf16.mxu0 0
      %614 = vmatpush1.bf16.msra.mxu0 0
      %615 = vmatprep.subr.bf16.mxu0 0
      %616 = vmatpush1.bf16.msra.mxu0 0
      %617 = vmatprep.subr.bf16.mxu0 0
      %618 = vmatpush1.bf16.msra.mxu0 0
      %619 = vmatprep.mubr.bf16.mxu0 0
      %620 = vmatmul.mubr.bf16.gmra.mrb[0].mxu0 %v414
      %v621 = vpop.f32.mrb[0].mxu0
      %v622 = vadd.f32 %v534, %v621
      %v623 = vpop.f32.mrb[0].mxu0
      %v624 = vpop.f32.mrb[0].mxu0
      %v625 = vpop.f32.mrb[0].mxu0
      %626 = vdwg.mxu0
      %v627 = vld [vmem:[%s407 + $0x1] sm:$0xff]
      %v628 = vpack.c.bf16 %v627, %v627
      %s629 = scalar_lea.vmem %s1, 128
      %v630 = vld [vmem:[%s629] sm:$0xf]
      %v631 = vld [vmem:[%s629 + $0x4] sm:$0xf]
      %v632 = vld [vmem:[%s629 + $0x8] sm:$0xf]
      %v633 = vld [vmem:[%s629 + $0xc] sm:$0xf]
      %v634 = vld [vmem:[%s629 + $0x10] sm:$0xf]
      %v635 = vld [vmem:[%s629 + $0x14] sm:$0xf]
      %v636 = vld [vmem:[%s629 + $0x18] sm:$0xf]
      %v637 = vld [vmem:[%s629 + $0x1c] sm:$0xf]
      %v638 = vld [vmem:[%s629 + $0x20] sm:$0xf]
      %v639 = vld [vmem:[%s629 + $0x24] sm:$0xf]
      %v640 = vld [vmem:[%s629 + $0x28] sm:$0xf]
      %v641 = vld [vmem:[%s629 + $0x2c] sm:$0xf]
      %v642 = vld [vmem:[%s629 + $0x30] sm:$0xf]
      %v643 = vld [vmem:[%s629 + $0x34] sm:$0xf]
      %v644 = vld [vmem:[%s629 + $0x38] sm:$0xf]
      %v645 = vld [vmem:[%s629 + $0x3c] sm:$0xf]
      %v662 = vunpack.c.l.b16 %v630
      %v663 = vunpack.c.l.b16 %v631
      %v664 = vunpack.c.l.b16 %v632
      %v665 = vunpack.c.l.b16 %v633
      %v666 = vunpack.c.l.b16 %v634
      %v667 = vunpack.c.l.b16 %v635
      %v668 = vunpack.c.l.b16 %v636
      %v669 = vunpack.c.l.b16 %v637
      %v670 = vunpack.c.l.b16 %v638
      %v671 = vunpack.c.l.b16 %v639
      %v672 = vunpack.c.l.b16 %v640
      %v673 = vunpack.c.l.b16 %v641
      %v674 = vunpack.c.l.b16 %v642
      %v675 = vunpack.c.l.b16 %v643
      %v676 = vunpack.c.l.b16 %v644
      %v677 = vunpack.c.l.b16 %v645
      %v678 = vpack.c.b16 %v663, %v662
      %v679 = vpack.c.b16 %v665, %v664
      %v680 = vpack.c.b16 %v667, %v666
      %v681 = vpack.c.b16 %v669, %v668
      %v682 = vpack.c.b16 %v671, %v670
      %v683 = vpack.c.b16 %v673, %v672
      %v684 = vpack.c.b16 %v675, %v674
      %v685 = vpack.c.b16 %v677, %v676
      %694 = vmatprep.subr.bf16.mxu0 0
      %695 = vmatpush1.bf16.msra.mxu0 %v678
      %696 = vmatprep.subr.bf16.mxu0 0
      %697 = vmatpush1.bf16.msra.mxu0 %v679
      %698 = vmatprep.subr.bf16.mxu0 0
      %699 = vmatpush1.bf16.msra.mxu0 %v680
      %700 = vmatprep.subr.bf16.mxu0 0
      %701 = vmatpush1.bf16.msra.mxu0 %v681
      %702 = vmatprep.subr.bf16.mxu0 0
      %703 = vmatpush1.bf16.msra.mxu0 %v682
      %704 = vmatprep.subr.bf16.mxu0 0
      %705 = vmatpush1.bf16.msra.mxu0 %v683
      %706 = vmatprep.subr.bf16.mxu0 0
      %707 = vmatpush1.bf16.msra.mxu0 %v684
      %708 = vmatprep.subr.bf16.mxu0 0
      %709 = vmatpush1.bf16.msra.mxu0 %v685
      %710 = vmatprep.subr.bf16.mxu0 0
      %711 = vmatpush1.bf16.msra.mxu0 0
      %712 = vmatprep.subr.bf16.mxu0 0
      %713 = vmatpush1.bf16.msra.mxu0 0
      %714 = vmatprep.subr.bf16.mxu0 0
      %715 = vmatpush1.bf16.msra.mxu0 0
      %716 = vmatprep.subr.bf16.mxu0 0
      %717 = vmatpush1.bf16.msra.mxu0 0
      %718 = vmatprep.subr.bf16.mxu0 0
      %719 = vmatpush1.bf16.msra.mxu0 0
      %720 = vmatprep.subr.bf16.mxu0 0
      %721 = vmatpush1.bf16.msra.mxu0 0
      %722 = vmatprep.subr.bf16.mxu0 0
      %723 = vmatpush1.bf16.msra.mxu0 0
      %724 = vmatprep.subr.bf16.mxu0 0
      %725 = vmatpush1.bf16.msra.mxu0 0
      %726 = vmatprep.mubr.bf16.mxu0 0
      %727 = vmatmul.mubr.bf16.gmra.mrb[0].mxu0 %v628
      %v728 = vpop.f32.mrb[0].mxu0
      %v729 = vadd.f32 0.0, %v728
      %v730 = vpop.f32.mrb[0].mxu0
      %v731 = vpop.f32.mrb[0].mxu0
      %v732 = vpop.f32.mrb[0].mxu0
      %733 = vdwg.mxu0
      %v734 = vadd.f32 %v622, %v729
      %v735 = vld [vmem:[%s431 + $0x1] sm:$0xff]
      %v736 = vpack.c.bf16 %v735, %v735
      %s737 = scalar_lea.vmem %s1, 192
      %v738 = vld [vmem:[%s737] sm:$0xf]
      %v739 = vld [vmem:[%s737 + $0x4] sm:$0xf]
      %v740 = vld [vmem:[%s737 + $0x8] sm:$0xf]
      %v741 = vld [vmem:[%s737 + $0xc] sm:$0xf]
      %v742 = vld [vmem:[%s737 + $0x10] sm:$0xf]
      %v743 = vld [vmem:[%s737 + $0x14] sm:$0xf]
      %v744 = vld [vmem:[%s737 + $0x18] sm:$0xf]
      %v745 = vld [vmem:[%s737 + $0x1c] sm:$0xf]
      %v746 = vld [vmem:[%s737 + $0x20] sm:$0xf]
      %v747 = vld [vmem:[%s737 + $0x24] sm:$0xf]
      %v748 = vld [vmem:[%s737 + $0x28] sm:$0xf]
      %v749 = vld [vmem:[%s737 + $0x2c] sm:$0xf]
      %v750 = vld [vmem:[%s737 + $0x30] sm:$0xf]
      %v751 = vld [vmem:[%s737 + $0x34] sm:$0xf]
      %v752 = vld [vmem:[%s737 + $0x38] sm:$0xf]
      %v753 = vld [vmem:[%s737 + $0x3c] sm:$0xf]
      %v770 = vunpack.c.l.b16 %v738
      %v771 = vunpack.c.l.b16 %v739
      %v772 = vunpack.c.l.b16 %v740
      %v773 = vunpack.c.l.b16 %v741
      %v774 = vunpack.c.l.b16 %v742
      %v775 = vunpack.c.l.b16 %v743
      %v776 = vunpack.c.l.b16 %v744
      %v777 = vunpack.c.l.b16 %v745
      %v778 = vunpack.c.l.b16 %v746
      %v779 = vunpack.c.l.b16 %v747
      %v780 = vunpack.c.l.b16 %v748
      %v781 = vunpack.c.l.b16 %v749
      %v782 = vunpack.c.l.b16 %v750
      %v783 = vunpack.c.l.b16 %v751
      %v784 = vunpack.c.l.b16 %v752
      %v785 = vunpack.c.l.b16 %v753
      %v786 = vpack.c.b16 %v771, %v770
      %v787 = vpack.c.b16 %v773, %v772
      %v788 = vpack.c.b16 %v775, %v774
      %v789 = vpack.c.b16 %v777, %v776
      %v790 = vpack.c.b16 %v779, %v778
      %v791 = vpack.c.b16 %v781, %v780
      %v792 = vpack.c.b16 %v783, %v782
      %v793 = vpack.c.b16 %v785, %v784
      %802 = vmatprep.subr.bf16.mxu0 0
      %803 = vmatpush1.bf16.msra.mxu0 %v786
      %804 = vmatprep.subr.bf16.mxu0 0
      %805 = vmatpush1.bf16.msra.mxu0 %v787
      %806 = vmatprep.subr.bf16.mxu0 0
      %807 = vmatpush1.bf16.msra.mxu0 %v788
      %808 = vmatprep.subr.bf16.mxu0 0
      %809 = vmatpush1.bf16.msra.mxu0 %v789
      %810 = vmatprep.subr.bf16.mxu0 0
      %811 = vmatpush1.bf16.msra.mxu0 %v790
      %812 = vmatprep.subr.bf16.mxu0 0
      %813 = vmatpush1.bf16.msra.mxu0 %v791
      %814 = vmatprep.subr.bf16.mxu0 0
      %815 = vmatpush1.bf16.msra.mxu0 %v792
      %816 = vmatprep.subr.bf16.mxu0 0
      %817 = vmatpush1.bf16.msra.mxu0 %v793
      %818 = vmatprep.subr.bf16.mxu0 0
      %819 = vmatpush1.bf16.msra.mxu0 0
      %820 = vmatprep.subr.bf16.mxu0 0
      %821 = vmatpush1.bf16.msra.mxu0 0
      %822 = vmatprep.subr.bf16.mxu0 0
      %823 = vmatpush1.bf16.msra.mxu0 0
      %824 = vmatprep.subr.bf16.mxu0 0
      %825 = vmatpush1.bf16.msra.mxu0 0
      %826 = vmatprep.subr.bf16.mxu0 0
      %827 = vmatpush1.bf16.msra.mxu0 0
      %828 = vmatprep.subr.bf16.mxu0 0
      %829 = vmatpush1.bf16.msra.mxu0 0
      %830 = vmatprep.subr.bf16.mxu0 0
      %831 = vmatpush1.bf16.msra.mxu0 0
      %832 = vmatprep.subr.bf16.mxu0 0
      %833 = vmatpush1.bf16.msra.mxu0 0
      %834 = vmatprep.mubr.bf16.mxu0 0
      %835 = vmatmul.mubr.bf16.gmra.mrb[0].mxu0 %v736
      %v836 = vpop.f32.mrb[0].mxu0
      %v837 = vadd.f32 0.0, %v836
      %v838 = vpop.f32.mrb[0].mxu0
      %v839 = vpop.f32.mrb[0].mxu0
      %v840 = vpop.f32.mrb[0].mxu0
      %841 = vdwg.mxu0
      %v842 = vadd.f32 %v734, %v837
      %v843 = vld [vmem:[%s2] sm:$0x1]
      %v845 = vlaneseq
      %v846 = vshrl.u32 %v845, 7
      %v847 = vsub.s32 0, %v846
      %v848 = vrot.slane %v843, %v847
      %v850 = vmul.f32 %v842, %v848
      %v851 = vld [vmem:[%s3] sm:$0x1]
      %v853 = vlaneseq
      %v854 = vshrl.u32 %v853, 7
      %v855 = vsub.s32 0, %v854
      %v856 = vrot.slane %v851, %v855
      %v858 = vadd.f32 %v850, %v856
      %v859 = vmax.f32 %v858, 0.0
      %860 = vst [vmem:[#allocation2] sm:$0xff] %v859
      %v861 = vld [vmem:[#allocation2] sm:$0xff]
      %v862 = vpack.c.bf16 %v861, %v861
      %v863 = vld [vmem:[%s4] sm:$0xff]
      %v864 = vld [vmem:[%s4 + $0x8] sm:$0xff]
      %v865 = vld [vmem:[%s4 + $0x10] sm:$0xff]
      %v866 = vld [vmem:[%s4 + $0x18] sm:$0xff]
      %v867 = vld [vmem:[%s4 + $0x20] sm:$0xff]
      %v868 = vld [vmem:[%s4 + $0x28] sm:$0xff]
      %v869 = vld [vmem:[%s4 + $0x30] sm:$0xff]
      %v870 = vld [vmem:[%s4 + $0x38] sm:$0xff]
      %v871 = vld [vmem:[%s4 + $0x40] sm:$0xff]
      %v872 = vld [vmem:[%s4 + $0x48] sm:$0xff]
      %v873 = vld [vmem:[%s4 + $0x50] sm:$0xff]
      %v874 = vld [vmem:[%s4 + $0x58] sm:$0xff]
      %v875 = vld [vmem:[%s4 + $0x60] sm:$0xff]
      %v876 = vld [vmem:[%s4 + $0x68] sm:$0xff]
      %v877 = vld [vmem:[%s4 + $0x70] sm:$0xff]
      %v878 = vld [vmem:[%s4 + $0x78] sm:$0xff]
      %v879 = vld [vmem:[#allocation2 + $0x1] sm:$0xff]
      %v880 = vpack.c.bf16 %v879, %v879
      %s881 = scalar_lea.vmem %s4, 128
      %v882 = vld [vmem:[%s881] sm:$0xff]
      %v883 = vld [vmem:[%s881 + $0x8] sm:$0xff]
      %v884 = vld [vmem:[%s881 + $0x10] sm:$0xff]
      %v885 = vld [vmem:[%s881 + $0x18] sm:$0xff]
      %v886 = vld [vmem:[%s881 + $0x20] sm:$0xff]
      %v887 = vld [vmem:[%s881 + $0x28] sm:$0xff]
      %v888 = vld [vmem:[%s881 + $0x30] sm:$0xff]
      %v889 = vld [vmem:[%s881 + $0x38] sm:$0xff]
      %v890 = vld [vmem:[%s881 + $0x40] sm:$0xff]
      %v891 = vld [vmem:[%s881 + $0x48] sm:$0xff]
      %v892 = vld [vmem:[%s881 + $0x50] sm:$0xff]
      %v893 = vld [vmem:[%s881 + $0x58] sm:$0xff]
      %v894 = vld [vmem:[%s881 + $0x60] sm:$0xff]
      %v895 = vld [vmem:[%s881 + $0x68] sm:$0xff]
      %v896 = vld [vmem:[%s881 + $0x70] sm:$0xff]
      %v897 = vld [vmem:[%s881 + $0x78] sm:$0xff]
      %v914 = vunpack.c.l.b16 %v882
      %v915 = vunpack.c.h.b16 %v882
      %v916 = vunpack.c.l.b16 %v883
      %v917 = vunpack.c.h.b16 %v883
      %v918 = vunpack.c.l.b16 %v884
      %v919 = vunpack.c.h.b16 %v884
      %v920 = vunpack.c.l.b16 %v885
      %v921 = vunpack.c.h.b16 %v885
      %v922 = vunpack.c.l.b16 %v886
      %v923 = vunpack.c.h.b16 %v886
      %v924 = vunpack.c.l.b16 %v887
      %v925 = vunpack.c.h.b16 %v887
      %v926 = vunpack.c.l.b16 %v888
      %v927 = vunpack.c.h.b16 %v888
      %v928 = vunpack.c.l.b16 %v889
      %v929 = vunpack.c.h.b16 %v889
      %v930 = vunpack.c.l.b16 %v890
      %v931 = vunpack.c.h.b16 %v890
      %v932 = vunpack.c.l.b16 %v891
      %v933 = vunpack.c.h.b16 %v891
      %v934 = vunpack.c.l.b16 %v892
      %v935 = vunpack.c.h.b16 %v892
      %v936 = vunpack.c.l.b16 %v893
      %v937 = vunpack.c.h.b16 %v893
      %v938 = vunpack.c.l.b16 %v894
      %v939 = vunpack.c.h.b16 %v894
      %v940 = vunpack.c.l.b16 %v895
      %v941 = vunpack.c.h.b16 %v895
      %v942 = vunpack.c.l.b16 %v896
      %v943 = vunpack.c.h.b16 %v896
      %v944 = vunpack.c.l.b16 %v897
      %v945 = vunpack.c.h.b16 %v897
      %v946 = vpack.c.b16 %v916, %v914
      %v947 = vpack.c.b16 %v917, %v915
      %v948 = vpack.c.b16 %v920, %v918
      %v949 = vpack.c.b16 %v921, %v919
      %v950 = vpack.c.b16 %v924, %v922
      %v951 = vpack.c.b16 %v925, %v923
      %v952 = vpack.c.b16 %v928, %v926
      %v953 = vpack.c.b16 %v929, %v927
      %v954 = vpack.c.b16 %v932, %v930
      %v955 = vpack.c.b16 %v933, %v931
      %v956 = vpack.c.b16 %v936, %v934
      %v957 = vpack.c.b16 %v937, %v935
      %v958 = vpack.c.b16 %v940, %v938
      %v959 = vpack.c.b16 %v941, %v939
      %v960 = vpack.c.b16 %v944, %v942
      %v961 = vpack.c.b16 %v945, %v943
      %978 = vmatprep.subr.bf16.mxu0 %v947
      %979 = vmatpush1.bf16.msra.mxu0 %v946
      %980 = vmatprep.subr.bf16.mxu0 %v949
      %981 = vmatpush1.bf16.msra.mxu0 %v948
      %982 = vmatprep.subr.bf16.mxu0 %v951
      %983 = vmatpush1.bf16.msra.mxu0 %v950
      %984 = vmatprep.subr.bf16.mxu0 %v953
      %985 = vmatpush1.bf16.msra.mxu0 %v952
      %986 = vmatprep.subr.bf16.mxu0 %v955
      %987 = vmatpush1.bf16.msra.mxu0 %v954
      %988 = vmatprep.subr.bf16.mxu0 %v957
      %989 = vmatpush1.bf16.msra.mxu0 %v956
      %990 = vmatprep.subr.bf16.mxu0 %v959
      %991 = vmatpush1.bf16.msra.mxu0 %v958
      %992 = vmatprep.subr.bf16.mxu0 %v961
      %993 = vmatpush1.bf16.msra.mxu0 %v960
      %994 = vmatprep.subr.bf16.mxu0 0
      %995 = vmatpush1.bf16.msra.mxu0 0
      %996 = vmatprep.subr.bf16.mxu0 0
      %997 = vmatpush1.bf16.msra.mxu0 0
      %998 = vmatprep.subr.bf16.mxu0 0
      %999 = vmatpush1.bf16.msra.mxu0 0
      %1000 = vmatprep.subr.bf16.mxu0 0
      %1001 = vmatpush1.bf16.msra.mxu0 0
      %1002 = vmatprep.subr.bf16.mxu0 0
      %1003 = vmatpush1.bf16.msra.mxu0 0
      %1004 = vmatprep.subr.bf16.mxu0 0
      %1005 = vmatpush1.bf16.msra.mxu0 0
      %1006 = vmatprep.subr.bf16.mxu0 0
      %1007 = vmatpush1.bf16.msra.mxu0 0
      %1008 = vmatprep.subr.bf16.mxu0 0
      %1009 = vmatpush1.bf16.msra.mxu0 0
      %1010 = vmatprep.mubr.bf16.mxu0 0
      %1011 = vmatmul.mubr.bf16.gmra.mrb[0].mxu0 %v880
      %v1012 = vpop.f32.mrb[0].mxu0
      %v1013 = vadd.f32 0.0, %v1012
      %v1014 = vpop.f32.mrb[0].mxu0
      %v1015 = vadd.f32 0.0, %v1014
      %v1016 = vpop.f32.mrb[0].mxu0
      %v1017 = vpop.f32.mrb[0].mxu0
      %1018 = vdwg.mxu0
      %v1035 = vunpack.c.l.b16 %v863
      %v1036 = vunpack.c.h.b16 %v863
      %v1037 = vunpack.c.l.b16 %v864
      %v1038 = vunpack.c.h.b16 %v864
      %v1039 = vunpack.c.l.b16 %v865
      %v1040 = vunpack.c.h.b16 %v865
      %v1041 = vunpack.c.l.b16 %v866
      %v1042 = vunpack.c.h.b16 %v866
      %v1043 = vunpack.c.l.b16 %v867
      %v1044 = vunpack.c.h.b16 %v867
      %v1045 = vunpack.c.l.b16 %v868
      %v1046 = vunpack.c.h.b16 %v868
      %v1047 = vunpack.c.l.b16 %v869
      %v1048 = vunpack.c.h.b16 %v869
      %v1049 = vunpack.c.l.b16 %v870
      %v1050 = vunpack.c.h.b16 %v870
      %v1051 = vunpack.c.l.b16 %v871
      %v1052 = vunpack.c.h.b16 %v871
      %v1053 = vunpack.c.l.b16 %v872
      %v1054 = vunpack.c.h.b16 %v872
      %v1055 = vunpack.c.l.b16 %v873
      %v1056 = vunpack.c.h.b16 %v873
      %v1057 = vunpack.c.l.b16 %v874
      %v1058 = vunpack.c.h.b16 %v874
      %v1059 = vunpack.c.l.b16 %v875
      %v1060 = vunpack.c.h.b16 %v875
      %v1061 = vunpack.c.l.b16 %v876
      %v1062 = vunpack.c.h.b16 %v876
      %v1063 = vunpack.c.l.b16 %v877
      %v1064 = vunpack.c.h.b16 %v877
      %v1065 = vunpack.c.l.b16 %v878
      %v1066 = vunpack.c.h.b16 %v878
      %v1067 = vpack.c.b16 %v1037, %v1035
      %v1068 = vpack.c.b16 %v1038, %v1036
      %v1069 = vpack.c.b16 %v1041, %v1039
      %v1070 = vpack.c.b16 %v1042, %v1040
      %v1071 = vpack.c.b16 %v1045, %v1043
      %v1072 = vpack.c.b16 %v1046, %v1044
      %v1073 = vpack.c.b16 %v1049, %v1047
      %v1074 = vpack.c.b16 %v1050, %v1048
      %v1075 = vpack.c.b16 %v1053, %v1051
      %v1076 = vpack.c.b16 %v1054, %v1052
      %v1077 = vpack.c.b16 %v1057, %v1055
      %v1078 = vpack.c.b16 %v1058, %v1056
      %v1079 = vpack.c.b16 %v1061, %v1059
      %v1080 = vpack.c.b16 %v1062, %v1060
      %v1081 = vpack.c.b16 %v1065, %v1063
      %v1082 = vpack.c.b16 %v1066, %v1064
      %1099 = vmatprep.subr.bf16.mxu0 %v1068
      %1100 = vmatpush1.bf16.msra.mxu0 %v1067
      %1101 = vmatprep.subr.bf16.mxu0 %v1070
      %1102 = vmatpush1.bf16.msra.mxu0 %v1069
      %1103 = vmatprep.subr.bf16.mxu0 %v1072
      %1104 = vmatpush1.bf16.msra.mxu0 %v1071
      %1105 = vmatprep.subr.bf16.mxu0 %v1074
      %1106 = vmatpush1.bf16.msra.mxu0 %v1073
      %1107 = vmatprep.subr.bf16.mxu0 %v1076
      %1108 = vmatpush1.bf16.msra.mxu0 %v1075
      %1109 = vmatprep.subr.bf16.mxu0 %v1078
      %1110 = vmatpush1.bf16.msra.mxu0 %v1077
      %1111 = vmatprep.subr.bf16.mxu0 %v1080
      %1112 = vmatpush1.bf16.msra.mxu0 %v1079
      %1113 = vmatprep.subr.bf16.mxu0 %v1082
      %1114 = vmatpush1.bf16.msra.mxu0 %v1081
      %1115 = vmatprep.subr.bf16.mxu0 0
      %1116 = vmatpush1.bf16.msra.mxu0 0
      %1117 = vmatprep.subr.bf16.mxu0 0
      %1118 = vmatpush1.bf16.msra.mxu0 0
      %1119 = vmatprep.subr.bf16.mxu0 0
      %1120 = vmatpush1.bf16.msra.mxu0 0
      %1121 = vmatprep.subr.bf16.mxu0 0
      %1122 = vmatpush1.bf16.msra.mxu0 0
      %1123 = vmatprep.subr.bf16.mxu0 0
      %1124 = vmatpush1.bf16.msra.mxu0 0
      %1125 = vmatprep.subr.bf16.mxu0 0
      %1126 = vmatpush1.bf16.msra.mxu0 0
      %1127 = vmatprep.subr.bf16.mxu0 0
      %1128 = vmatpush1.bf16.msra.mxu0 0
      %1129 = vmatprep.subr.bf16.mxu0 0
      %1130 = vmatpush1.bf16.msra.mxu0 0
      %1131 = vmatprep.mubr.bf16.mxu0 0
      %1132 = vmatmul.mubr.bf16.gmra.mrb[0].mxu0 %v862
      %v1133 = vpop.f32.mrb[0].mxu0
      %v1134 = vadd.f32 %v1013, %v1133
      %v1135 = vpop.f32.mrb[0].mxu0
      %v1136 = vadd.f32 %v1015, %v1135
      %v1137 = vpop.f32.mrb[0].mxu0
      %v1138 = vpop.f32.mrb[0].mxu0
      %1139 = vdwg.mxu0
      %v1140 = vld [vmem:[%s5] sm:$0x3]
      %v1142 = vlaneseq
      %v1143 = vshrl.u32 %v1142, 7
      %v1144 = vsub.s32 0, %v1143
      %v1145 = vrot.slane %v1140, %v1144
      %v1146 = vlaneseq
      %v1147 = vshrl.u32 %v1146, 7
      %v1148 = vsub.s32 1, %v1147
      %v1149 = vrot.slane %v1140, %v1148
      %v1152 = vmul.f32 %v1134, %v1145
      %v1153 = vmul.f32 %v1136, %v1149
      %v1154 = vld [vmem:[%s6] sm:$0x3]
      %v1156 = vlaneseq
      %v1157 = vshrl.u32 %v1156, 7
      %v1158 = vsub.s32 0, %v1157
      %v1159 = vrot.slane %v1154, %v1158
      %v1160 = vlaneseq
      %v1161 = vshrl.u32 %v1160, 7
      %v1162 = vsub.s32 1, %v1161
      %v1163 = vrot.slane %v1154, %v1162
      %v1166 = vadd.f32 %v1152, %v1159
      %v1167 = vadd.f32 %v1153, %v1163
      %v1168 = vmax.f32 %v1166, 0.0
      %v1169 = vmax.f32 %v1167, 0.0
      %1170 = vst [vmem:[#allocation3] sm:$0xff] %v1168
      %1171 = vst [vmem:[#allocation3 + $0x8] sm:$0xff] %v1169
      %v1172 = vld [vmem:[#allocation3] sm:$0xff]
      %v1173 = vld [vmem:[#allocation3 + $0x8] sm:$0xff]
      %v1174 = vpack.c.bf16 %v1172, %v1172
      %v1175 = vpack.c.bf16 %v1173, %v1173
      %v1176 = vld [vmem:[%s7] sm:$0xff]
      %v1177 = vld [vmem:[%s7 + $0x8] sm:$0xff]
      %v1178 = vld [vmem:[%s7 + $0x10] sm:$0xff]
      %v1179 = vld [vmem:[%s7 + $0x18] sm:$0xff]
      %v1180 = vld [vmem:[%s7 + $0x20] sm:$0xff]
      %v1181 = vld [vmem:[%s7 + $0x28] sm:$0xff]
      %v1182 = vld [vmem:[%s7 + $0x30] sm:$0xff]
      %v1183 = vld [vmem:[%s7 + $0x38] sm:$0xff]
      %v1184 = vld [vmem:[%s7 + $0x40] sm:$0xff]
      %v1185 = vld [vmem:[%s7 + $0x48] sm:$0xff]
      %v1186 = vld [vmem:[%s7 + $0x50] sm:$0xff]
      %v1187 = vld [vmem:[%s7 + $0x58] sm:$0xff]
      %v1188 = vld [vmem:[%s7 + $0x60] sm:$0xff]
      %v1189 = vld [vmem:[%s7 + $0x68] sm:$0xff]
      %v1190 = vld [vmem:[%s7 + $0x70] sm:$0xff]
      %v1191 = vld [vmem:[%s7 + $0x78] sm:$0xff]
      %v1192 = vld [vmem:[%s7 + $0x80] sm:$0xff]
      %v1193 = vld [vmem:[%s7 + $0x88] sm:$0xff]
      %v1194 = vld [vmem:[%s7 + $0x90] sm:$0xff]
      %v1195 = vld [vmem:[%s7 + $0x98] sm:$0xff]
      %v1196 = vld [vmem:[%s7 + $0xa0] sm:$0xff]
      %v1197 = vld [vmem:[%s7 + $0xa8] sm:$0xff]
      %v1198 = vld [vmem:[%s7 + $0xb0] sm:$0xff]
      %v1199 = vld [vmem:[%s7 + $0xb8] sm:$0xff]
      %v1200 = vld [vmem:[%s7 + $0xc0] sm:$0xff]
      %v1201 = vld [vmem:[%s7 + $0xc8] sm:$0xff]
      %v1202 = vld [vmem:[%s7 + $0xd0] sm:$0xff]
      %v1203 = vld [vmem:[%s7 + $0xd8] sm:$0xff]
      %v1204 = vld [vmem:[%s7 + $0xe0] sm:$0xff]
      %v1205 = vld [vmem:[%s7 + $0xe8] sm:$0xff]
      %v1206 = vld [vmem:[%s7 + $0xf0] sm:$0xff]
      %v1207 = vld [vmem:[%s7 + $0xf8] sm:$0xff]
      %v1208 = vld [vmem:[#allocation3] sm:$0xfe]
      %v1209 = vld [vmem:[#allocation3 + $0x8] sm:$0xfe]
      %v1210 = vld [vmem:[#allocation3 + $0x10] sm:$0x1]
      %v1211 = vld [vmem:[#allocation3 + $0x18] sm:$0x1]
      %v1212 = vpack.c.bf16 %v1210, %v1208
      %v1213 = vpack.c.bf16 %v1211, %v1209
      %s1214 = scalar_lea.vmem %s7, 256
      %v1215 = vld [vmem:[%s1214] sm:$0xff]
      %v1216 = vld [vmem:[%s1214 + $0x8] sm:$0xff]
      %v1217 = vld [vmem:[%s1214 + $0x10] sm:$0xff]
      %v1218 = vld [vmem:[%s1214 + $0x18] sm:$0xff]
      %v1219 = vld [vmem:[%s1214 + $0x20] sm:$0xff]
      %v1220 = vld [vmem:[%s1214 + $0x28] sm:$0xff]
      %v1221 = vld [vmem:[%s1214 + $0x30] sm:$0xff]
      %v1222 = vld [vmem:[%s1214 + $0x38] sm:$0xff]
      %v1223 = vld [vmem:[%s1214 + $0x40] sm:$0xff]
      %v1224 = vld [vmem:[%s1214 + $0x48] sm:$0xff]
      %v1225 = vld [vmem:[%s1214 + $0x50] sm:$0xff]
      %v1226 = vld [vmem:[%s1214 + $0x58] sm:$0xff]
      %v1227 = vld [vmem:[%s1214 + $0x60] sm:$0xff]
      %v1228 = vld [vmem:[%s1214 + $0x68] sm:$0xff]
      %v1229 = vld [vmem:[%s1214 + $0x70] sm:$0xff]
      %v1230 = vld [vmem:[%s1214 + $0x78] sm:$0xff]
      %v1231 = vld [vmem:[%s1214 + $0x80] sm:$0xff]
      %v1232 = vld [vmem:[%s1214 + $0x88] sm:$0xff]
      %v1233 = vld [vmem:[%s1214 + $0x90] sm:$0xff]
      %v1234 = vld [vmem:[%s1214 + $0x98] sm:$0xff]
      %v1235 = vld [vmem:[%s1214 + $0xa0] sm:$0xff]
      %v1236 = vld [vmem:[%s1214 + $0xa8] sm:$0xff]
      %v1237 = vld [vmem:[%s1214 + $0xb0] sm:$0xff]
      %v1238 = vld [vmem:[%s1214 + $0xb8] sm:$0xff]
      %v1239 = vld [vmem:[%s1214 + $0xc0] sm:$0xff]
      %v1240 = vld [vmem:[%s1214 + $0xc8] sm:$0xff]
      %v1241 = vld [vmem:[%s1214 + $0xd0] sm:$0xff]
      %v1242 = vld [vmem:[%s1214 + $0xd8] sm:$0xff]
      %v1243 = vld [vmem:[%s1214 + $0xe0] sm:$0xff]
      %v1244 = vld [vmem:[%s1214 + $0xe8] sm:$0xff]
      %v1245 = vld [vmem:[%s1214 + $0xf0] sm:$0xff]
      %v1246 = vld [vmem:[%s1214 + $0xf8] sm:$0xff]
      %v1248 = vshrl.u32 %v1212, 16
      %v1250 = vshll.u32 %v1212, 16
      %v1252 = vrot.slane %v1250, 1
      %v1253 = vor.u32 %v1248, %v1252
      %v1255 = vshrl.u32 %v1213, 16
      %v1257 = vshll.u32 %v1213, 16
      %v1259 = vrot.slane %v1257, 1
      %v1260 = vor.u32 %v1255, %v1259
      %v1295 = vunpack.c.l.b16 %v1215
      %v1296 = vunpack.c.h.b16 %v1215
      %v1297 = vunpack.c.l.b16 %v1216
      %v1298 = vunpack.c.h.b16 %v1216
      %v1299 = vunpack.c.l.b16 %v1217
      %v1300 = vunpack.c.h.b16 %v1217
      %v1301 = vunpack.c.l.b16 %v1218
      %v1302 = vunpack.c.h.b16 %v1218
      %v1303 = vunpack.c.l.b16 %v1219
      %v1304 = vunpack.c.h.b16 %v1219
      %v1305 = vunpack.c.l.b16 %v1220
      %v1306 = vunpack.c.h.b16 %v1220
      %v1307 = vunpack.c.l.b16 %v1221
      %v1308 = vunpack.c.h.b16 %v1221
      %v1309 = vunpack.c.l.b16 %v1222
      %v1310 = vunpack.c.h.b16 %v1222
      %v1311 = vunpack.c.l.b16 %v1223
      %v1312 = vunpack.c.h.b16 %v1223
      %v1313 = vunpack.c.l.b16 %v1224
      %v1314 = vunpack.c.h.b16 %v1224
      %v1315 = vunpack.c.l.b16 %v1225
      %v1316 = vunpack.c.h.b16 %v1225
      %v1317 = vunpack.c.l.b16 %v1226
      %v1318 = vunpack.c.h.b16 %v1226
      %v1319 = vunpack.c.l.b16 %v1227
      %v1320 = vunpack.c.h.b16 %v1227
      %v1321 = vunpack.c.l.b16 %v1228
      %v1322 = vunpack.c.h.b16 %v1228
      %v1323 = vunpack.c.l.b16 %v1229
      %v1324 = vunpack.c.h.b16 %v1229
      %v1325 = vunpack.c.l.b16 %v1230
      %v1326 = vunpack.c.h.b16 %v1230
      %v1327 = vunpack.c.l.b16 %v1231
      %v1328 = vunpack.c.h.b16 %v1231
      %v1329 = vunpack.c.l.b16 %v1232
      %v1330 = vunpack.c.h.b16 %v1232
      %v1331 = vunpack.c.l.b16 %v1233
      %v1332 = vunpack.c.h.b16 %v1233
      %v1333 = vunpack.c.l.b16 %v1234
      %v1334 = vunpack.c.h.b16 %v1234
      %v1335 = vunpack.c.l.b16 %v1235
      %v1336 = vunpack.c.h.b16 %v1235
      %v1337 = vunpack.c.l.b16 %v1236
      %v1338 = vunpack.c.h.b16 %v1236
      %v1339 = vunpack.c.l.b16 %v1237
      %v1340 = vunpack.c.h.b16 %v1237
      %v1341 = vunpack.c.l.b16 %v1238
      %v1342 = vunpack.c.h.b16 %v1238
      %v1343 = vunpack.c.l.b16 %v1239
      %v1344 = vunpack.c.h.b16 %v1239
      %v1345 = vunpack.c.l.b16 %v1240
      %v1346 = vunpack.c.h.b16 %v1240
      %v1347 = vunpack.c.l.b16 %v1241
      %v1348 = vunpack.c.h.b16 %v1241
      %v1349 = vunpack.c.l.b16 %v1242
      %v1350 = vunpack.c.h.b16 %v1242
      %v1351 = vunpack.c.l.b16 %v1243
      %v1352 = vunpack.c.h.b16 %v1243
      %v1353 = vunpack.c.l.b16 %v1244
      %v1354 = vunpack.c.h.b16 %v1244
      %v1355 = vunpack.c.l.b16 %v1245
      %v1356 = vunpack.c.h.b16 %v1245
      %v1357 = vunpack.c.l.b16 %v1246
      %v1358 = vunpack.c.h.b16 %v1246
      %v1359 = vpack.c.b16 %v1297, %v1295
      %v1360 = vpack.c.b16 %v1298, %v1296
      %v1361 = vpack.c.b16 %v1301, %v1299
      %v1362 = vpack.c.b16 %v1302, %v1300
      %v1363 = vpack.c.b16 %v1305, %v1303
      %v1364 = vpack.c.b16 %v1306, %v1304
      %v1365 = vpack.c.b16 %v1309, %v1307
      %v1366 = vpack.c.b16 %v1310, %v1308
      %v1367 = vpack.c.b16 %v1313, %v1311
      %v1368 = vpack.c.b16 %v1314, %v1312
      %v1369 = vpack.c.b16 %v1317, %v1315
      %v1370 = vpack.c.b16 %v1318, %v1316
      %v1371 = vpack.c.b16 %v1321, %v1319
      %v1372 = vpack.c.b16 %v1322, %v1320
      %v1373 = vpack.c.b16 %v1325, %v1323
      %v1374 = vpack.c.b16 %v1326, %v1324
      %v1375 = vpack.c.b16 %v1329, %v1327
      %v1376 = vpack.c.b16 %v1330, %v1328
      %v1377 = vpack.c.b16 %v1333, %v1331
      %v1378 = vpack.c.b16 %v1334, %v1332
      %v1379 = vpack.c.b16 %v1337, %v1335
      %v1380 = vpack.c.b16 %v1338, %v1336
      %v1381 = vpack.c.b16 %v1341, %v1339
      %v1382 = vpack.c.b16 %v1342, %v1340
      %v1383 = vpack.c.b16 %v1345, %v1343
      %v1384 = vpack.c.b16 %v1346, %v1344
      %v1385 = vpack.c.b16 %v1349, %v1347
      %v1386 = vpack.c.b16 %v1350, %v1348
      %v1387 = vpack.c.b16 %v1353, %v1351
      %v1388 = vpack.c.b16 %v1354, %v1352
      %v1389 = vpack.c.b16 %v1357, %v1355
      %v1390 = vpack.c.b16 %v1358, %v1356
      %1423 = vmatprep.subr.bf16.mxu0 %v1360
      %1424 = vmatpush1.bf16.msra.mxu0 %v1359
      %1425 = vmatprep.subr.bf16.mxu0 %v1362
      %1426 = vmatpush1.bf16.msra.mxu0 %v1361
      %1427 = vmatprep.subr.bf16.mxu0 %v1364
      %1428 = vmatpush1.bf16.msra.mxu0 %v1363
      %1429 = vmatprep.subr.bf16.mxu0 %v1366
      %1430 = vmatpush1.bf16.msra.mxu0 %v1365
      %1431 = vmatprep.subr.bf16.mxu0 %v1368
      %1432 = vmatpush1.bf16.msra.mxu0 %v1367
      %1433 = vmatprep.subr.bf16.mxu0 %v1370
      %1434 = vmatpush1.bf16.msra.mxu0 %v1369
      %1435 = vmatprep.subr.bf16.mxu0 %v1372
      %1436 = vmatpush1.bf16.msra.mxu0 %v1371
      %1437 = vmatprep.subr.bf16.mxu0 %v1374
      %1438 = vmatpush1.bf16.msra.mxu0 %v1373
      %1439 = vmatprep.subr.bf16.mxu0 %v1376
      %1440 = vmatpush1.bf16.msra.mxu0 %v1375
      %1441 = vmatprep.subr.bf16.mxu0 %v1378
      %1442 = vmatpush1.bf16.msra.mxu0 %v1377
      %1443 = vmatprep.subr.bf16.mxu0 %v1380
      %1444 = vmatpush1.bf16.msra.mxu0 %v1379
      %1445 = vmatprep.subr.bf16.mxu0 %v1382
      %1446 = vmatpush1.bf16.msra.mxu0 %v1381
      %1447 = vmatprep.subr.bf16.mxu0 %v1384
      %1448 = vmatpush1.bf16.msra.mxu0 %v1383
      %1449 = vmatprep.subr.bf16.mxu0 %v1386
      %1450 = vmatpush1.bf16.msra.mxu0 %v1385
      %1451 = vmatprep.subr.bf16.mxu0 %v1388
      %1452 = vmatpush1.bf16.msra.mxu0 %v1387
      %1453 = vmatprep.subr.bf16.mxu0 %v1390
      %1454 = vmatpush1.bf16.msra.mxu0 %v1389
      %1455 = vmatprep.mubr.bf16.mxu0 %v1260
      %1456 = vmatmul.mubr.bf16.gmra.mrb[0].mxu0 %v1253
      %v1457 = vpop.f32.mrb[0].mxu0
      %v1458 = vadd.f32 0.0, %v1457
      %v1459 = vpop.f32.mrb[0].mxu0
      %v1460 = vadd.f32 0.0, %v1459
      %v1461 = vpop.f32.mrb[0].mxu0
      %v1462 = vpop.f32.mrb[0].mxu0
      %1463 = vdwg.mxu0
      %v1496 = vunpack.c.l.b16 %v1176
      %v1497 = vunpack.c.h.b16 %v1176
      %v1498 = vunpack.c.l.b16 %v1177
      %v1499 = vunpack.c.h.b16 %v1177
      %v1500 = vunpack.c.l.b16 %v1178
      %v1501 = vunpack.c.h.b16 %v1178
      %v1502 = vunpack.c.l.b16 %v1179
      %v1503 = vunpack.c.h.b16 %v1179
      %v1504 = vunpack.c.l.b16 %v1180
      %v1505 = vunpack.c.h.b16 %v1180
      %v1506 = vunpack.c.l.b16 %v1181
      %v1507 = vunpack.c.h.b16 %v1181
      %v1508 = vunpack.c.l.b16 %v1182
      %v1509 = vunpack.c.h.b16 %v1182
      %v1510 = vunpack.c.l.b16 %v1183
      %v1511 = vunpack.c.h.b16 %v1183
      %v1512 = vunpack.c.l.b16 %v1184
      %v1513 = vunpack.c.h.b16 %v1184
      %v1514 = vunpack.c.l.b16 %v1185
      %v1515 = vunpack.c.h.b16 %v1185
      %v1516 = vunpack.c.l.b16 %v1186
      %v1517 = vunpack.c.h.b16 %v1186
      %v1518 = vunpack.c.l.b16 %v1187
      %v1519 = vunpack.c.h.b16 %v1187
      %v1520 = vunpack.c.l.b16 %v1188
      %v1521 = vunpack.c.h.b16 %v1188
      %v1522 = vunpack.c.l.b16 %v1189
      %v1523 = vunpack.c.h.b16 %v1189
      %v1524 = vunpack.c.l.b16 %v1190
      %v1525 = vunpack.c.h.b16 %v1190
      %v1526 = vunpack.c.l.b16 %v1191
      %v1527 = vunpack.c.h.b16 %v1191
      %v1528 = vunpack.c.l.b16 %v1192
      %v1529 = vunpack.c.h.b16 %v1192
      %v1530 = vunpack.c.l.b16 %v1193
      %v1531 = vunpack.c.h.b16 %v1193
      %v1532 = vunpack.c.l.b16 %v1194
      %v1533 = vunpack.c.h.b16 %v1194
      %v1534 = vunpack.c.l.b16 %v1195
      %v1535 = vunpack.c.h.b16 %v1195
      %v1536 = vunpack.c.l.b16 %v1196
      %v1537 = vunpack.c.h.b16 %v1196
      %v1538 = vunpack.c.l.b16 %v1197
      %v1539 = vunpack.c.h.b16 %v1197
      %v1540 = vunpack.c.l.b16 %v1198
      %v1541 = vunpack.c.h.b16 %v1198
      %v1542 = vunpack.c.l.b16 %v1199
      %v1543 = vunpack.c.h.b16 %v1199
      %v1544 = vunpack.c.l.b16 %v1200
      %v1545 = vunpack.c.h.b16 %v1200
      %v1546 = vunpack.c.l.b16 %v1201
      %v1547 = vunpack.c.h.b16 %v1201
      %v1548 = vunpack.c.l.b16 %v1202
      %v1549 = vunpack.c.h.b16 %v1202
      %v1550 = vunpack.c.l.b16 %v1203
      %v1551 = vunpack.c.h.b16 %v1203
      %v1552 = vunpack.c.l.b16 %v1204
      %v1553 = vunpack.c.h.b16 %v1204
      %v1554 = vunpack.c.l.b16 %v1205
      %v1555 = vunpack.c.h.b16 %v1205
      %v1556 = vunpack.c.l.b16 %v1206
      %v1557 = vunpack.c.h.b16 %v1206
      %v1558 = vunpack.c.l.b16 %v1207
      %v1559 = vunpack.c.h.b16 %v1207
      %v1560 = vpack.c.b16 %v1498, %v1496
      %v1561 = vpack.c.b16 %v1499, %v1497
      %v1562 = vpack.c.b16 %v1502, %v1500
      %v1563 = vpack.c.b16 %v1503, %v1501
      %v1564 = vpack.c.b16 %v1506, %v1504
      %v1565 = vpack.c.b16 %v1507, %v1505
      %v1566 = vpack.c.b16 %v1510, %v1508
      %v1567 = vpack.c.b16 %v1511, %v1509
      %v1568 = vpack.c.b16 %v1514, %v1512
      %v1569 = vpack.c.b16 %v1515, %v1513
      %v1570 = vpack.c.b16 %v1518, %v1516
      %v1571 = vpack.c.b16 %v1519, %v1517
      %v1572 = vpack.c.b16 %v1522, %v1520
      %v1573 = vpack.c.b16 %v1523, %v1521
      %v1574 = vpack.c.b16 %v1526, %v1524
      %v1575 = vpack.c.b16 %v1527, %v1525
      %v1576 = vpack.c.b16 %v1530, %v1528
      %v1577 = vpack.c.b16 %v1531, %v1529
      %v1578 = vpack.c.b16 %v1534, %v1532
      %v1579 = vpack.c.b16 %v1535, %v1533
      %v1580 = vpack.c.b16 %v1538, %v1536
      %v1581 = vpack.c.b16 %v1539, %v1537
      %v1582 = vpack.c.b16 %v1542, %v1540
      %v1583 = vpack.c.b16 %v1543, %v1541
      %v1584 = vpack.c.b16 %v1546, %v1544
      %v1585 = vpack.c.b16 %v1547, %v1545
      %v1586 = vpack.c.b16 %v1550, %v1548
      %v1587 = vpack.c.b16 %v1551, %v1549
      %v1588 = vpack.c.b16 %v1554, %v1552
      %v1589 = vpack.c.b16 %v1555, %v1553
      %v1590 = vpack.c.b16 %v1558, %v1556
      %v1591 = vpack.c.b16 %v1559, %v1557
      %1624 = vmatprep.subr.bf16.mxu0 %v1561
      %1625 = vmatpush1.bf16.msra.mxu0 %v1560
      %1626 = vmatprep.subr.bf16.mxu0 %v1563
      %1627 = vmatpush1.bf16.msra.mxu0 %v1562
      %1628 = vmatprep.subr.bf16.mxu0 %v1565
      %1629 = vmatpush1.bf16.msra.mxu0 %v1564
      %1630 = vmatprep.subr.bf16.mxu0 %v1567
      %1631 = vmatpush1.bf16.msra.mxu0 %v1566
      %1632 = vmatprep.subr.bf16.mxu0 %v1569
      %1633 = vmatpush1.bf16.msra.mxu0 %v1568
      %1634 = vmatprep.subr.bf16.mxu0 %v1571
      %1635 = vmatpush1.bf16.msra.mxu0 %v1570
      %1636 = vmatprep.subr.bf16.mxu0 %v1573
      %1637 = vmatpush1.bf16.msra.mxu0 %v1572
      %1638 = vmatprep.subr.bf16.mxu0 %v1575
      %1639 = vmatpush1.bf16.msra.mxu0 %v1574
      %1640 = vmatprep.subr.bf16.mxu0 %v1577
      %1641 = vmatpush1.bf16.msra.mxu0 %v1576
      %1642 = vmatprep.subr.bf16.mxu0 %v1579
      %1643 = vmatpush1.bf16.msra.mxu0 %v1578
      %1644 = vmatprep.subr.bf16.mxu0 %v1581
      %1645 = vmatpush1.bf16.msra.mxu0 %v1580
      %1646 = vmatprep.subr.bf16.mxu0 %v1583
      %1647 = vmatpush1.bf16.msra.mxu0 %v1582
      %1648 = vmatprep.subr.bf16.mxu0 %v1585
      %1649 = vmatpush1.bf16.msra.mxu0 %v1584
      %1650 = vmatprep.subr.bf16.mxu0 %v1587
      %1651 = vmatpush1.bf16.msra.mxu0 %v1586
      %1652 = vmatprep.subr.bf16.mxu0 %v1589
      %1653 = vmatpush1.bf16.msra.mxu0 %v1588
      %1654 = vmatprep.subr.bf16.mxu0 %v1591
      %1655 = vmatpush1.bf16.msra.mxu0 %v1590
      %1656 = vmatprep.mubr.bf16.mxu0 %v1175
      %1657 = vmatmul.mubr.bf16.gmra.mrb[0].mxu0 %v1174
      %v1658 = vpop.f32.mrb[0].mxu0
      %v1659 = vadd.f32 %v1458, %v1658
      %v1660 = vpop.f32.mrb[0].mxu0
      %v1661 = vadd.f32 %v1460, %v1660
      %v1662 = vpop.f32.mrb[0].mxu0
      %v1663 = vpop.f32.mrb[0].mxu0
      %1664 = vdwg.mxu0
      %v1665 = vld [vmem:[%s8] sm:$0x3]
      %v1667 = vlaneseq
      %v1668 = vshrl.u32 %v1667, 7
      %v1669 = vsub.s32 0, %v1668
      %v1670 = vrot.slane %v1665, %v1669
      %v1671 = vlaneseq
      %v1672 = vshrl.u32 %v1671, 7
      %v1673 = vsub.s32 1, %v1672
      %v1674 = vrot.slane %v1665, %v1673
      %v1677 = vmul.f32 %v1659, %v1670
      %v1678 = vmul.f32 %v1661, %v1674
      %v1679 = vld [vmem:[%s9] sm:$0x3]
      %v1681 = vlaneseq
      %v1682 = vshrl.u32 %v1681, 7
      %v1683 = vsub.s32 0, %v1682
      %v1684 = vrot.slane %v1679, %v1683
      %v1685 = vlaneseq
      %v1686 = vshrl.u32 %v1685, 7
      %v1687 = vsub.s32 1, %v1686
      %v1688 = vrot.slane %v1679, %v1687
      %v1691 = vadd.f32 %v1677, %v1684
      %v1692 = vadd.f32 %v1678, %v1688
      %v1693 = vmax.f32 %v1691, 0.0
      %v1694 = vmax.f32 %v1692, 0.0
      %1695 = vst [vmem:[#allocation4] sm:$0xff] %v1693
      %1696 = vst [vmem:[#allocation4 + $0x8] sm:$0xff] %v1694
      %v1697 = vld [vmem:[#allocation4] ss:$8 sm:$0x3]
      %v1698 = vld [vmem:[%s10] sm:$0xff]
      %v1699 = vld [vmem:[%s10 + $0x8] sm:$0xff]
      %v1700 = vld [vmem:[%s10 + $0x10] sm:$0xff]
      %v1701 = vld [vmem:[%s10 + $0x18] sm:$0xff]
      %v1702 = vld [vmem:[%s10 + $0x20] sm:$0xff]
      %v1703 = vld [vmem:[%s10 + $0x28] sm:$0xff]
      %v1704 = vld [vmem:[%s10 + $0x30] sm:$0xff]
      %v1705 = vld [vmem:[%s10 + $0x38] sm:$0xff]
      %v1706 = vld [vmem:[%s10 + $0x40] sm:$0xff]
      %v1707 = vld [vmem:[%s10 + $0x48] sm:$0xff]
      %v1708 = vld [vmem:[%s10 + $0x50] sm:$0xff]
      %v1709 = vld [vmem:[%s10 + $0x58] sm:$0xff]
      %v1710 = vld [vmem:[%s10 + $0x60] sm:$0xff]
      %v1711 = vld [vmem:[%s10 + $0x68] sm:$0xff]
      %v1712 = vld [vmem:[%s10 + $0x70] sm:$0xff]
      %v1713 = vld [vmem:[%s10 + $0x78] sm:$0xff]
      %v1714 = vld [vmem:[%s10 + $0x80] sm:$0xff]
      %v1715 = vld [vmem:[%s10 + $0x88] sm:$0xff]
      %v1716 = vld [vmem:[%s10 + $0x90] sm:$0xff]
      %v1717 = vld [vmem:[%s10 + $0x98] sm:$0xff]
      %v1718 = vld [vmem:[%s10 + $0xa0] sm:$0xff]
      %v1719 = vld [vmem:[%s10 + $0xa8] sm:$0xff]
      %v1720 = vld [vmem:[%s10 + $0xb0] sm:$0xff]
      %v1721 = vld [vmem:[%s10 + $0xb8] sm:$0xff]
      %v1722 = vld [vmem:[%s10 + $0xc0] sm:$0xff]
      %v1723 = vld [vmem:[%s10 + $0xc8] sm:$0xff]
      %v1724 = vld [vmem:[%s10 + $0xd0] sm:$0xff]
      %v1725 = vld [vmem:[%s10 + $0xd8] sm:$0xff]
      %v1726 = vld [vmem:[%s10 + $0xe0] sm:$0xff]
      %v1727 = vld [vmem:[%s10 + $0xe8] sm:$0xff]
      %v1728 = vld [vmem:[%s10 + $0xf0] sm:$0xff]
      %v1729 = vld [vmem:[%s10 + $0xf8] sm:$0xff]
      %s1730 = scalar_lea.vmem [#allocation4], 1
      %v1731 = vld [vmem:[%s1730] ss:$8 sm:$0x3]
      %s1732 = scalar_lea.vmem %s10, 256
      %v1733 = vld [vmem:[%s1732] sm:$0xff]
      %v1734 = vld [vmem:[%s1732 + $0x8] sm:$0xff]
      %v1735 = vld [vmem:[%s1732 + $0x10] sm:$0xff]
      %v1736 = vld [vmem:[%s1732 + $0x18] sm:$0xff]
      %v1737 = vld [vmem:[%s1732 + $0x20] sm:$0xff]
      %v1738 = vld [vmem:[%s1732 + $0x28] sm:$0xff]
      %v1739 = vld [vmem:[%s1732 + $0x30] sm:$0xff]
      %v1740 = vld [vmem:[%s1732 + $0x38] sm:$0xff]
      %v1741 = vld [vmem:[%s1732 + $0x40] sm:$0xff]
      %v1742 = vld [vmem:[%s1732 + $0x48] sm:$0xff]
      %v1743 = vld [vmem:[%s1732 + $0x50] sm:$0xff]
      %v1744 = vld [vmem:[%s1732 + $0x58] sm:$0xff]
      %v1745 = vld [vmem:[%s1732 + $0x60] sm:$0xff]
      %v1746 = vld [vmem:[%s1732 + $0x68] sm:$0xff]
      %v1747 = vld [vmem:[%s1732 + $0x70] sm:$0xff]
      %v1748 = vld [vmem:[%s1732 + $0x78] sm:$0xff]
      %v1749 = vld [vmem:[%s1732 + $0x80] sm:$0xff]
      %v1750 = vld [vmem:[%s1732 + $0x88] sm:$0xff]
      %v1751 = vld [vmem:[%s1732 + $0x90] sm:$0xff]
      %v1752 = vld [vmem:[%s1732 + $0x98] sm:$0xff]
      %v1753 = vld [vmem:[%s1732 + $0xa0] sm:$0xff]
      %v1754 = vld [vmem:[%s1732 + $0xa8] sm:$0xff]
      %v1755 = vld [vmem:[%s1732 + $0xb0] sm:$0xff]
      %v1756 = vld [vmem:[%s1732 + $0xb8] sm:$0xff]
      %v1757 = vld [vmem:[%s1732 + $0xc0] sm:$0xff]
      %v1758 = vld [vmem:[%s1732 + $0xc8] sm:$0xff]
      %v1759 = vld [vmem:[%s1732 + $0xd0] sm:$0xff]
      %v1760 = vld [vmem:[%s1732 + $0xd8] sm:$0xff]
      %v1761 = vld [vmem:[%s1732 + $0xe0] sm:$0xff]
      %v1762 = vld [vmem:[%s1732 + $0xe8] sm:$0xff]
      %v1763 = vld [vmem:[%s1732 + $0xf0] sm:$0xff]
      %v1764 = vld [vmem:[%s1732 + $0xf8] sm:$0xff]
      %v1766 = vlaneseq
      %v1767 = vshrl.u32 %v1766, 7
      %v1768 = vsub.s32 0, %v1767
      %v1769 = vrot.slane %v1731, %v1768
      %v1770 = vlaneseq
      %v1771 = vshrl.u32 %v1770, 7
      %v1772 = vsub.s32 1, %v1771
      %v1773 = vrot.slane %v1731, %v1772
      %1776 = vmatprep.subr.mxu0 0.0
      %1777 = vmatpush1.msra.mxu0 %v1733
      %1778 = vmatprep.subr.mxu0 0.0
      %1779 = vmatpush1.msra.mxu0 %v1734
      %1780 = vmatprep.subr.mxu0 0.0
      %1781 = vmatpush1.msra.mxu0 %v1735
      %1782 = vmatprep.subr.mxu0 0.0
      %1783 = vmatpush1.msra.mxu0 %v1736
      %1784 = vmatprep.subr.mxu0 0.0
      %1785 = vmatpush1.msra.mxu0 %v1737
      %1786 = vmatprep.subr.mxu0 0.0
      %1787 = vmatpush1.msra.mxu0 %v1738
      %1788 = vmatprep.subr.mxu0 0.0
      %1789 = vmatpush1.msra.mxu0 %v1739
      %1790 = vmatprep.subr.mxu0 0.0
      %1791 = vmatpush1.msra.mxu0 %v1740
      %1792 = vmatprep.subr.mxu0 0.0
      %1793 = vmatpush1.msra.mxu0 %v1741
      %1794 = vmatprep.subr.mxu0 0.0
      %1795 = vmatpush1.msra.mxu0 %v1742
      %1796 = vmatprep.subr.mxu0 0.0
      %1797 = vmatpush1.msra.mxu0 %v1743
      %1798 = vmatprep.subr.mxu0 0.0
      %1799 = vmatpush1.msra.mxu0 %v1744
      %1800 = vmatprep.subr.mxu0 0.0
      %1801 = vmatpush1.msra.mxu0 %v1745
      %1802 = vmatprep.subr.mxu0 0.0
      %1803 = vmatpush1.msra.mxu0 %v1746
      %1804 = vmatprep.subr.mxu0 0.0
      %1805 = vmatpush1.msra.mxu0 %v1747
      %1806 = vmatprep.subr.mxu0 0.0
      %1807 = vmatpush1.msra.mxu0 %v1748
      %1808 = vmatprep.subr.mxu0 0.0
      %1809 = vmatpush1.msra.mxu0 %v1749
      %1810 = vmatprep.subr.mxu0 0.0
      %1811 = vmatpush1.msra.mxu0 %v1750
      %1812 = vmatprep.subr.mxu0 0.0
      %1813 = vmatpush1.msra.mxu0 %v1751
      %1814 = vmatprep.subr.mxu0 0.0
      %1815 = vmatpush1.msra.mxu0 %v1752
      %1816 = vmatprep.subr.mxu0 0.0
      %1817 = vmatpush1.msra.mxu0 %v1753
      %1818 = vmatprep.subr.mxu0 0.0
      %1819 = vmatpush1.msra.mxu0 %v1754
      %1820 = vmatprep.subr.mxu0 0.0
      %1821 = vmatpush1.msra.mxu0 %v1755
      %1822 = vmatprep.subr.mxu0 0.0
      %1823 = vmatpush1.msra.mxu0 %v1756
      %1824 = vmatprep.subr.mxu0 0.0
      %1825 = vmatpush1.msra.mxu0 %v1757
      %1826 = vmatprep.subr.mxu0 0.0
      %1827 = vmatpush1.msra.mxu0 %v1758
      %1828 = vmatprep.subr.mxu0 0.0
      %1829 = vmatpush1.msra.mxu0 %v1759
      %1830 = vmatprep.subr.mxu0 0.0
      %1831 = vmatpush1.msra.mxu0 %v1760
      %1832 = vmatprep.subr.mxu0 0.0
      %1833 = vmatpush1.msra.mxu0 %v1761
      %1834 = vmatprep.subr.mxu0 0.0
      %1835 = vmatpush1.msra.mxu0 %v1762
      %1836 = vmatprep.subr.mxu0 0.0
      %1837 = vmatpush1.msra.mxu0 %v1763
      %1838 = vmatprep.subr.mxu0 0.0
      %1839 = vmatpush1.msra.mxu0 %v1764
      %1840 = vmatprep.mubr.f32.mxu0 %v1773
      %1841 = vmatmul.mubr.f32.gmra.mrb[0].mxu0 %v1769
      %v1842 = vpop.f32.mrb[0].mxu0
      %v1843 = vadd.f32 0.0, %v1842
      %v1844 = vpop.f32.mrb[0].mxu0
      %1845 = vdwg.mxu0
      %v1847 = vlaneseq
      %v1848 = vshrl.u32 %v1847, 7
      %v1849 = vsub.s32 0, %v1848
      %v1850 = vrot.slane %v1697, %v1849
      %v1851 = vlaneseq
      %v1852 = vshrl.u32 %v1851, 7
      %v1853 = vsub.s32 1, %v1852
      %v1854 = vrot.slane %v1697, %v1853
      %1857 = vmatprep.subr.mxu0 0.0
      %1858 = vmatpush1.msra.mxu0 %v1698
      %1859 = vmatprep.subr.mxu0 0.0
      %1860 = vmatpush1.msra.mxu0 %v1699
      %1861 = vmatprep.subr.mxu0 0.0
      %1862 = vmatpush1.msra.mxu0 %v1700
      %1863 = vmatprep.subr.mxu0 0.0
      %1864 = vmatpush1.msra.mxu0 %v1701
      %1865 = vmatprep.subr.mxu0 0.0
      %1866 = vmatpush1.msra.mxu0 %v1702
      %1867 = vmatprep.subr.mxu0 0.0
      %1868 = vmatpush1.msra.mxu0 %v1703
      %1869 = vmatprep.subr.mxu0 0.0
      %1870 = vmatpush1.msra.mxu0 %v1704
      %1871 = vmatprep.subr.mxu0 0.0
      %1872 = vmatpush1.msra.mxu0 %v1705
      %1873 = vmatprep.subr.mxu0 0.0
      %1874 = vmatpush1.msra.mxu0 %v1706
      %1875 = vmatprep.subr.mxu0 0.0
      %1876 = vmatpush1.msra.mxu0 %v1707
      %1877 = vmatprep.subr.mxu0 0.0
      %1878 = vmatpush1.msra.mxu0 %v1708
      %1879 = vmatprep.subr.mxu0 0.0
      %1880 = vmatpush1.msra.mxu0 %v1709
      %1881 = vmatprep.subr.mxu0 0.0
      %1882 = vmatpush1.msra.mxu0 %v1710
      %1883 = vmatprep.subr.mxu0 0.0
      %1884 = vmatpush1.msra.mxu0 %v1711
      %1885 = vmatprep.subr.mxu0 0.0
      %1886 = vmatpush1.msra.mxu0 %v1712
      %1887 = vmatprep.subr.mxu0 0.0
      %1888 = vmatpush1.msra.mxu0 %v1713
      %1889 = vmatprep.subr.mxu0 0.0
      %1890 = vmatpush1.msra.mxu0 %v1714
      %1891 = vmatprep.subr.mxu0 0.0
      %1892 = vmatpush1.msra.mxu0 %v1715
      %1893 = vmatprep.subr.mxu0 0.0
      %1894 = vmatpush1.msra.mxu0 %v1716
      %1895 = vmatprep.subr.mxu0 0.0
      %1896 = vmatpush1.msra.mxu0 %v1717
      %1897 = vmatprep.subr.mxu0 0.0
      %1898 = vmatpush1.msra.mxu0 %v1718
      %1899 = vmatprep.subr.mxu0 0.0
      %1900 = vmatpush1.msra.mxu0 %v1719
      %1901 = vmatprep.subr.mxu0 0.0
      %1902 = vmatpush1.msra.mxu0 %v1720
      %1903 = vmatprep.subr.mxu0 0.0
      %1904 = vmatpush1.msra.mxu0 %v1721
      %1905 = vmatprep.subr.mxu0 0.0
      %1906 = vmatpush1.msra.mxu0 %v1722
      %1907 = vmatprep.subr.mxu0 0.0
      %1908 = vmatpush1.msra.mxu0 %v1723
      %1909 = vmatprep.subr.mxu0 0.0
      %1910 = vmatpush1.msra.mxu0 %v1724
      %1911 = vmatprep.subr.mxu0 0.0
      %1912 = vmatpush1.msra.mxu0 %v1725
      %1913 = vmatprep.subr.mxu0 0.0
      %1914 = vmatpush1.msra.mxu0 %v1726
      %1915 = vmatprep.subr.mxu0 0.0
      %1916 = vmatpush1.msra.mxu0 %v1727
      %1917 = vmatprep.subr.mxu0 0.0
      %1918 = vmatpush1.msra.mxu0 %v1728
      %1919 = vmatprep.subr.mxu0 0.0
      %1920 = vmatpush1.msra.mxu0 %v1729
      %1921 = vmatprep.mubr.f32.mxu0 %v1854
      %1922 = vmatmul.mubr.f32.gmra.mrb[0].mxu0 %v1850
      %v1923 = vpop.f32.mrb[0].mxu0
      %v1924 = vadd.f32 %v1843, %v1923
      %v1925 = vpop.f32.mrb[0].mxu0
      %1926 = vdwg.mxu0
      %s1927 = scalar_lea.vmem [#allocation4], 2
      %v1928 = vld [vmem:[%s1927] ss:$8 sm:$0x3]
      %s1929 = scalar_lea.vmem %s10, 512
      %v1930 = vld [vmem:[%s1929] sm:$0xff]
      %v1931 = vld [vmem:[%s1929 + $0x8] sm:$0xff]
      %v1932 = vld [vmem:[%s1929 + $0x10] sm:$0xff]
      %v1933 = vld [vmem:[%s1929 + $0x18] sm:$0xff]
      %v1934 = vld [vmem:[%s1929 + $0x20] sm:$0xff]
      %v1935 = vld [vmem:[%s1929 + $0x28] sm:$0xff]
      %v1936 = vld [vmem:[%s1929 + $0x30] sm:$0xff]
      %v1937 = vld [vmem:[%s1929 + $0x38] sm:$0xff]
      %v1938 = vld [vmem:[%s1929 + $0x40] sm:$0xff]
      %v1939 = vld [vmem:[%s1929 + $0x48] sm:$0xff]
      %v1940 = vld [vmem:[%s1929 + $0x50] sm:$0xff]
      %v1941 = vld [vmem:[%s1929 + $0x58] sm:$0xff]
      %v1942 = vld [vmem:[%s1929 + $0x60] sm:$0xff]
      %v1943 = vld [vmem:[%s1929 + $0x68] sm:$0xff]
      %v1944 = vld [vmem:[%s1929 + $0x70] sm:$0xff]
      %v1945 = vld [vmem:[%s1929 + $0x78] sm:$0xff]
      %v1946 = vld [vmem:[%s1929 + $0x80] sm:$0xff]
      %v1947 = vld [vmem:[%s1929 + $0x88] sm:$0xff]
      %v1948 = vld [vmem:[%s1929 + $0x90] sm:$0xff]
      %v1949 = vld [vmem:[%s1929 + $0x98] sm:$0xff]
      %v1950 = vld [vmem:[%s1929 + $0xa0] sm:$0xff]
      %v1951 = vld [vmem:[%s1929 + $0xa8] sm:$0xff]
      %v1952 = vld [vmem:[%s1929 + $0xb0] sm:$0xff]
      %v1953 = vld [vmem:[%s1929 + $0xb8] sm:$0xff]
      %v1954 = vld [vmem:[%s1929 + $0xc0] sm:$0xff]
      %v1955 = vld [vmem:[%s1929 + $0xc8] sm:$0xff]
      %v1956 = vld [vmem:[%s1929 + $0xd0] sm:$0xff]
      %v1957 = vld [vmem:[%s1929 + $0xd8] sm:$0xff]
      %v1958 = vld [vmem:[%s1929 + $0xe0] sm:$0xff]
      %v1959 = vld [vmem:[%s1929 + $0xe8] sm:$0xff]
      %v1960 = vld [vmem:[%s1929 + $0xf0] sm:$0xff]
      %v1961 = vld [vmem:[%s1929 + $0xf8] sm:$0xff]
      %v1963 = vlaneseq
      %v1964 = vshrl.u32 %v1963, 7
      %v1965 = vsub.s32 0, %v1964
      %v1966 = vrot.slane %v1928, %v1965
      %v1967 = vlaneseq
      %v1968 = vshrl.u32 %v1967, 7
      %v1969 = vsub.s32 1, %v1968
      %v1970 = vrot.slane %v1928, %v1969
      %1973 = vmatprep.subr.mxu0 0.0
      %1974 = vmatpush1.msra.mxu0 %v1930
      %1975 = vmatprep.subr.mxu0 0.0
      %1976 = vmatpush1.msra.mxu0 %v1931
      %1977 = vmatprep.subr.mxu0 0.0
      %1978 = vmatpush1.msra.mxu0 %v1932
      %1979 = vmatprep.subr.mxu0 0.0
      %1980 = vmatpush1.msra.mxu0 %v1933
      %1981 = vmatprep.subr.mxu0 0.0
      %1982 = vmatpush1.msra.mxu0 %v1934
      %1983 = vmatprep.subr.mxu0 0.0
      %1984 = vmatpush1.msra.mxu0 %v1935
      %1985 = vmatprep.subr.mxu0 0.0
      %1986 = vmatpush1.msra.mxu0 %v1936
      %1987 = vmatprep.subr.mxu0 0.0
      %1988 = vmatpush1.msra.mxu0 %v1937
      %1989 = vmatprep.subr.mxu0 0.0
      %1990 = vmatpush1.msra.mxu0 %v1938
      %1991 = vmatprep.subr.mxu0 0.0
      %1992 = vmatpush1.msra.mxu0 %v1939
      %1993 = vmatprep.subr.mxu0 0.0
      %1994 = vmatpush1.msra.mxu0 %v1940
      %1995 = vmatprep.subr.mxu0 0.0
      %1996 = vmatpush1.msra.mxu0 %v1941
      %1997 = vmatprep.subr.mxu0 0.0
      %1998 = vmatpush1.msra.mxu0 %v1942
      %1999 = vmatprep.subr.mxu0 0.0
      %2000 = vmatpush1.msra.mxu0 %v1943
      %2001 = vmatprep.subr.mxu0 0.0
      %2002 = vmatpush1.msra.mxu0 %v1944
      %2003 = vmatprep.subr.mxu0 0.0
      %2004 = vmatpush1.msra.mxu0 %v1945
      %2005 = vmatprep.subr.mxu0 0.0
      %2006 = vmatpush1.msra.mxu0 %v1946
      %2007 = vmatprep.subr.mxu0 0.0
      %2008 = vmatpush1.msra.mxu0 %v1947
      %2009 = vmatprep.subr.mxu0 0.0
      %2010 = vmatpush1.msra.mxu0 %v1948
      %2011 = vmatprep.subr.mxu0 0.0
      %2012 = vmatpush1.msra.mxu0 %v1949
      %2013 = vmatprep.subr.mxu0 0.0
      %2014 = vmatpush1.msra.mxu0 %v1950
      %2015 = vmatprep.subr.mxu0 0.0
      %2016 = vmatpush1.msra.mxu0 %v1951
      %2017 = vmatprep.subr.mxu0 0.0
      %2018 = vmatpush1.msra.mxu0 %v1952
      %2019 = vmatprep.subr.mxu0 0.0
      %2020 = vmatpush1.msra.mxu0 %v1953
      %2021 = vmatprep.subr.mxu0 0.0
      %2022 = vmatpush1.msra.mxu0 %v1954
      %2023 = vmatprep.subr.mxu0 0.0
      %2024 = vmatpush1.msra.mxu0 %v1955
      %2025 = vmatprep.subr.mxu0 0.0
      %2026 = vmatpush1.msra.mxu0 %v1956
      %2027 = vmatprep.subr.mxu0 0.0
      %2028 = vmatpush1.msra.mxu0 %v1957
      %2029 = vmatprep.subr.mxu0 0.0
      %2030 = vmatpush1.msra.mxu0 %v1958
      %2031 = vmatprep.subr.mxu0 0.0
      %2032 = vmatpush1.msra.mxu0 %v1959
      %2033 = vmatprep.subr.mxu0 0.0
      %2034 = vmatpush1.msra.mxu0 %v1960
      %2035 = vmatprep.subr.mxu0 0.0
      %2036 = vmatpush1.msra.mxu0 %v1961
      %2037 = vmatprep.mubr.f32.mxu0 %v1970
      %2038 = vmatmul.mubr.f32.gmra.mrb[0].mxu0 %v1966
      %v2039 = vpop.f32.mrb[0].mxu0
      %v2040 = vadd.f32 0.0, %v2039
      %v2041 = vpop.f32.mrb[0].mxu0
      %2042 = vdwg.mxu0
      %v2043 = vadd.f32 %v1924, %v2040
      %s2044 = scalar_lea.vmem [#allocation4], 3
      %v2045 = vld [vmem:[%s2044] ss:$8 sm:$0x3]
      %s2046 = scalar_lea.vmem %s10, 768
      %v2047 = vld [vmem:[%s2046] sm:$0xff]
      %v2048 = vld [vmem:[%s2046 + $0x8] sm:$0xff]
      %v2049 = vld [vmem:[%s2046 + $0x10] sm:$0xff]
      %v2050 = vld [vmem:[%s2046 + $0x18] sm:$0xff]
      %v2051 = vld [vmem:[%s2046 + $0x20] sm:$0xff]
      %v2052 = vld [vmem:[%s2046 + $0x28] sm:$0xff]
      %v2053 = vld [vmem:[%s2046 + $0x30] sm:$0xff]
      %v2054 = vld [vmem:[%s2046 + $0x38] sm:$0xff]
      %v2055 = vld [vmem:[%s2046 + $0x40] sm:$0xff]
      %v2056 = vld [vmem:[%s2046 + $0x48] sm:$0xff]
      %v2057 = vld [vmem:[%s2046 + $0x50] sm:$0xff]
      %v2058 = vld [vmem:[%s2046 + $0x58] sm:$0xff]
      %v2059 = vld [vmem:[%s2046 + $0x60] sm:$0xff]
      %v2060 = vld [vmem:[%s2046 + $0x68] sm:$0xff]
      %v2061 = vld [vmem:[%s2046 + $0x70] sm:$0xff]
      %v2062 = vld [vmem:[%s2046 + $0x78] sm:$0xff]
      %v2063 = vld [vmem:[%s2046 + $0x80] sm:$0xff]
      %v2064 = vld [vmem:[%s2046 + $0x88] sm:$0xff]
      %v2065 = vld [vmem:[%s2046 + $0x90] sm:$0xff]
      %v2066 = vld [vmem:[%s2046 + $0x98] sm:$0xff]
      %v2067 = vld [vmem:[%s2046 + $0xa0] sm:$0xff]
      %v2068 = vld [vmem:[%s2046 + $0xa8] sm:$0xff]
      %v2069 = vld [vmem:[%s2046 + $0xb0] sm:$0xff]
      %v2070 = vld [vmem:[%s2046 + $0xb8] sm:$0xff]
      %v2071 = vld [vmem:[%s2046 + $0xc0] sm:$0xff]
      %v2072 = vld [vmem:[%s2046 + $0xc8] sm:$0xff]
      %v2073 = vld [vmem:[%s2046 + $0xd0] sm:$0xff]
      %v2074 = vld [vmem:[%s2046 + $0xd8] sm:$0xff]
      %v2075 = vld [vmem:[%s2046 + $0xe0] sm:$0xff]
      %v2076 = vld [vmem:[%s2046 + $0xe8] sm:$0xff]
      %v2077 = vld [vmem:[%s2046 + $0xf0] sm:$0xff]
      %v2078 = vld [vmem:[%s2046 + $0xf8] sm:$0xff]
      %v2080 = vlaneseq
      %v2081 = vshrl.u32 %v2080, 7
      %v2082 = vsub.s32 0, %v2081
      %v2083 = vrot.slane %v2045, %v2082
      %v2084 = vlaneseq
      %v2085 = vshrl.u32 %v2084, 7
      %v2086 = vsub.s32 1, %v2085
      %v2087 = vrot.slane %v2045, %v2086
      %2090 = vmatprep.subr.mxu0 0.0
      %2091 = vmatpush1.msra.mxu0 %v2047
      %2092 = vmatprep.subr.mxu0 0.0
      %2093 = vmatpush1.msra.mxu0 %v2048
      %2094 = vmatprep.subr.mxu0 0.0
      %2095 = vmatpush1.msra.mxu0 %v2049
      %2096 = vmatprep.subr.mxu0 0.0
      %2097 = vmatpush1.msra.mxu0 %v2050
      %2098 = vmatprep.subr.mxu0 0.0
      %2099 = vmatpush1.msra.mxu0 %v2051
      %2100 = vmatprep.subr.mxu0 0.0
      %2101 = vmatpush1.msra.mxu0 %v2052
      %2102 = vmatprep.subr.mxu0 0.0
      %2103 = vmatpush1.msra.mxu0 %v2053
      %2104 = vmatprep.subr.mxu0 0.0
      %2105 = vmatpush1.msra.mxu0 %v2054
      %2106 = vmatprep.subr.mxu0 0.0
      %2107 = vmatpush1.msra.mxu0 %v2055
      %2108 = vmatprep.subr.mxu0 0.0
      %2109 = vmatpush1.msra.mxu0 %v2056
      %2110 = vmatprep.subr.mxu0 0.0
      %2111 = vmatpush1.msra.mxu0 %v2057
      %2112 = vmatprep.subr.mxu0 0.0
      %2113 = vmatpush1.msra.mxu0 %v2058
      %2114 = vmatprep.subr.mxu0 0.0
      %2115 = vmatpush1.msra.mxu0 %v2059
      %2116 = vmatprep.subr.mxu0 0.0
      %2117 = vmatpush1.msra.mxu0 %v2060
      %2118 = vmatprep.subr.mxu0 0.0
      %2119 = vmatpush1.msra.mxu0 %v2061
      %2120 = vmatprep.subr.mxu0 0.0
      %2121 = vmatpush1.msra.mxu0 %v2062
      %2122 = vmatprep.subr.mxu0 0.0
      %2123 = vmatpush1.msra.mxu0 %v2063
      %2124 = vmatprep.subr.mxu0 0.0
      %2125 = vmatpush1.msra.mxu0 %v2064
      %2126 = vmatprep.subr.mxu0 0.0
      %2127 = vmatpush1.msra.mxu0 %v2065
      %2128 = vmatprep.subr.mxu0 0.0
      %2129 = vmatpush1.msra.mxu0 %v2066
      %2130 = vmatprep.subr.mxu0 0.0
      %2131 = vmatpush1.msra.mxu0 %v2067
      %2132 = vmatprep.subr.mxu0 0.0
      %2133 = vmatpush1.msra.mxu0 %v2068
      %2134 = vmatprep.subr.mxu0 0.0
      %2135 = vmatpush1.msra.mxu0 %v2069
      %2136 = vmatprep.subr.mxu0 0.0
      %2137 = vmatpush1.msra.mxu0 %v2070
      %2138 = vmatprep.subr.mxu0 0.0
      %2139 = vmatpush1.msra.mxu0 %v2071
      %2140 = vmatprep.subr.mxu0 0.0
      %2141 = vmatpush1.msra.mxu0 %v2072
      %2142 = vmatprep.subr.mxu0 0.0
      %2143 = vmatpush1.msra.mxu0 %v2073
      %2144 = vmatprep.subr.mxu0 0.0
      %2145 = vmatpush1.msra.mxu0 %v2074
      %2146 = vmatprep.subr.mxu0 0.0
      %2147 = vmatpush1.msra.mxu0 %v2075
      %2148 = vmatprep.subr.mxu0 0.0
      %2149 = vmatpush1.msra.mxu0 %v2076
      %2150 = vmatprep.subr.mxu0 0.0
      %2151 = vmatpush1.msra.mxu0 %v2077
      %2152 = vmatprep.subr.mxu0 0.0
      %2153 = vmatpush1.msra.mxu0 %v2078
      %2154 = vmatprep.mubr.f32.mxu0 %v2087
      %2155 = vmatmul.mubr.f32.gmra.mrb[0].mxu0 %v2083
      %v2156 = vpop.f32.mrb[0].mxu0
      %v2157 = vadd.f32 0.0, %v2156
      %v2158 = vpop.f32.mrb[0].mxu0
      %2159 = vdwg.mxu0
      %v2160 = vadd.f32 %v2043, %v2157
      %s2161 = scalar_lea.vmem [#allocation4], 4
      %v2162 = vld [vmem:[%s2161] ss:$8 sm:$0x3]
      %s2163 = scalar_lea.vmem %s10, 1024
      %v2164 = vld [vmem:[%s2163] sm:$0xff]
      %v2165 = vld [vmem:[%s2163 + $0x8] sm:$0xff]
      %v2166 = vld [vmem:[%s2163 + $0x10] sm:$0xff]
      %v2167 = vld [vmem:[%s2163 + $0x18] sm:$0xff]
      %v2168 = vld [vmem:[%s2163 + $0x20] sm:$0xff]
      %v2169 = vld [vmem:[%s2163 + $0x28] sm:$0xff]
      %v2170 = vld [vmem:[%s2163 + $0x30] sm:$0xff]
      %v2171 = vld [vmem:[%s2163 + $0x38] sm:$0xff]
      %v2172 = vld [vmem:[%s2163 + $0x40] sm:$0xff]
      %v2173 = vld [vmem:[%s2163 + $0x48] sm:$0xff]
      %v2174 = vld [vmem:[%s2163 + $0x50] sm:$0xff]
      %v2175 = vld [vmem:[%s2163 + $0x58] sm:$0xff]
      %v2176 = vld [vmem:[%s2163 + $0x60] sm:$0xff]
      %v2177 = vld [vmem:[%s2163 + $0x68] sm:$0xff]
      %v2178 = vld [vmem:[%s2163 + $0x70] sm:$0xff]
      %v2179 = vld [vmem:[%s2163 + $0x78] sm:$0xff]
      %v2180 = vld [vmem:[%s2163 + $0x80] sm:$0xff]
      %v2181 = vld [vmem:[%s2163 + $0x88] sm:$0xff]
      %v2182 = vld [vmem:[%s2163 + $0x90] sm:$0xff]
      %v2183 = vld [vmem:[%s2163 + $0x98] sm:$0xff]
      %v2184 = vld [vmem:[%s2163 + $0xa0] sm:$0xff]
      %v2185 = vld [vmem:[%s2163 + $0xa8] sm:$0xff]
      %v2186 = vld [vmem:[%s2163 + $0xb0] sm:$0xff]
      %v2187 = vld [vmem:[%s2163 + $0xb8] sm:$0xff]
      %v2188 = vld [vmem:[%s2163 + $0xc0] sm:$0xff]
      %v2189 = vld [vmem:[%s2163 + $0xc8] sm:$0xff]
      %v2190 = vld [vmem:[%s2163 + $0xd0] sm:$0xff]
      %v2191 = vld [vmem:[%s2163 + $0xd8] sm:$0xff]
      %v2192 = vld [vmem:[%s2163 + $0xe0] sm:$0xff]
      %v2193 = vld [vmem:[%s2163 + $0xe8] sm:$0xff]
      %v2194 = vld [vmem:[%s2163 + $0xf0] sm:$0xff]
      %v2195 = vld [vmem:[%s2163 + $0xf8] sm:$0xff]
      %v2197 = vlaneseq
      %v2198 = vshrl.u32 %v2197, 7
      %v2199 = vsub.s32 0, %v2198
      %v2200 = vrot.slane %v2162, %v2199
      %v2201 = vlaneseq
      %v2202 = vshrl.u32 %v2201, 7
      %v2203 = vsub.s32 1, %v2202
      %v2204 = vrot.slane %v2162, %v2203
      %2207 = vmatprep.subr.mxu0 0.0
      %2208 = vmatpush1.msra.mxu0 %v2164
      %2209 = vmatprep.subr.mxu0 0.0
      %2210 = vmatpush1.msra.mxu0 %v2165
      %2211 = vmatprep.subr.mxu0 0.0
      %2212 = vmatpush1.msra.mxu0 %v2166
      %2213 = vmatprep.subr.mxu0 0.0
      %2214 = vmatpush1.msra.mxu0 %v2167
      %2215 = vmatprep.subr.mxu0 0.0
      %2216 = vmatpush1.msra.mxu0 %v2168
      %2217 = vmatprep.subr.mxu0 0.0
      %2218 = vmatpush1.msra.mxu0 %v2169
      %2219 = vmatprep.subr.mxu0 0.0
      %2220 = vmatpush1.msra.mxu0 %v2170
      %2221 = vmatprep.subr.mxu0 0.0
      %2222 = vmatpush1.msra.mxu0 %v2171
      %2223 = vmatprep.subr.mxu0 0.0
      %2224 = vmatpush1.msra.mxu0 %v2172
      %2225 = vmatprep.subr.mxu0 0.0
      %2226 = vmatpush1.msra.mxu0 %v2173
      %2227 = vmatprep.subr.mxu0 0.0
      %2228 = vmatpush1.msra.mxu0 %v2174
      %2229 = vmatprep.subr.mxu0 0.0
      %2230 = vmatpush1.msra.mxu0 %v2175
      %2231 = vmatprep.subr.mxu0 0.0
      %2232 = vmatpush1.msra.mxu0 %v2176
      %2233 = vmatprep.subr.mxu0 0.0
      %2234 = vmatpush1.msra.mxu0 %v2177
      %2235 = vmatprep.subr.mxu0 0.0
      %2236 = vmatpush1.msra.mxu0 %v2178
      %2237 = vmatprep.subr.mxu0 0.0
      %2238 = vmatpush1.msra.mxu0 %v2179
      %2239 = vmatprep.subr.mxu0 0.0
      %2240 = vmatpush1.msra.mxu0 %v2180
      %2241 = vmatprep.subr.mxu0 0.0
      %2242 = vmatpush1.msra.mxu0 %v2181
      %2243 = vmatprep.subr.mxu0 0.0
      %2244 = vmatpush1.msra.mxu0 %v2182
      %2245 = vmatprep.subr.mxu0 0.0
      %2246 = vmatpush1.msra.mxu0 %v2183
      %2247 = vmatprep.subr.mxu0 0.0
      %2248 = vmatpush1.msra.mxu0 %v2184
      %2249 = vmatprep.subr.mxu0 0.0
      %2250 = vmatpush1.msra.mxu0 %v2185
      %2251 = vmatprep.subr.mxu0 0.0
      %2252 = vmatpush1.msra.mxu0 %v2186
      %2253 = vmatprep.subr.mxu0 0.0
      %2254 = vmatpush1.msra.mxu0 %v2187
      %2255 = vmatprep.subr.mxu0 0.0
      %2256 = vmatpush1.msra.mxu0 %v2188
      %2257 = vmatprep.subr.mxu0 0.0
      %2258 = vmatpush1.msra.mxu0 %v2189
      %2259 = vmatprep.subr.mxu0 0.0
      %2260 = vmatpush1.msra.mxu0 %v2190
      %2261 = vmatprep.subr.mxu0 0.0
      %2262 = vmatpush1.msra.mxu0 %v2191
      %2263 = vmatprep.subr.mxu0 0.0
      %2264 = vmatpush1.msra.mxu0 %v2192
      %2265 = vmatprep.subr.mxu0 0.0
      %2266 = vmatpush1.msra.mxu0 %v2193
      %2267 = vmatprep.subr.mxu0 0.0
      %2268 = vmatpush1.msra.mxu0 %v2194
      %2269 = vmatprep.subr.mxu0 0.0
      %2270 = vmatpush1.msra.mxu0 %v2195
      %2271 = vmatprep.mubr.f32.mxu0 %v2204
      %2272 = vmatmul.mubr.f32.gmra.mrb[0].mxu0 %v2200
      %v2273 = vpop.f32.mrb[0].mxu0
      %v2274 = vadd.f32 0.0, %v2273
      %v2275 = vpop.f32.mrb[0].mxu0
      %2276 = vdwg.mxu0
      %v2277 = vadd.f32 %v2160, %v2274
      %v2278 = vld [vmem:[%s11] sm:$0x1]
      %v2279 = vadd.f32 %v2277, %v2278
      %2280 = vst [vmem:[%s411] sm:$0x1] %v2279
      %p2281 = scmp.lt.s32.totalorder %s23, 1
      %s2282 = scalar_select %p2281, %s23, 1
      %s2283 = smul.addr %s2282, 8
      %s2284 = scalar_lea.vmem %s12, %s2283
      // Predicated region
      $region69: #{dqn_forward.1} parent=67 // pred_check
        %p2285 = pneg %p298
      $region70: #{dqn_forward.1} parent=67 // pred_check_branch
        %2287 = sbr.rel (%p2285) target = $region72
      $region71: #{dqn_forward.1} parent=67 // pred_region
        _
      $region72: #{dqn_forward.1} parent=67 // pred_fallthru
        _
    $region68: #{dqn_forward.1} parent=5 // pred_fallthru
      _
    %p2288 = scmp.le.s32.totalorder 2, %s18
    // Predicated region
    $region73: #{dqn_forward.1} parent=5 // pred_check
      %p2289 = pneg %p2288
    $region74: #{dqn_forward.1} parent=5 // pred_check_branch
      %2291 = sbr.rel (%p2289) target = $region76
    $region75: #{dqn_forward.1} parent=5 // pred_region
      %s2292 = ssub.s32 %s18, 2
      // Predicated region
      $region77: #{dqn_forward.1} parent=75 // pred_check
        %p2293 = pneg %p304
      $region78: #{dqn_forward.1} parent=75 // pred_check_branch
        %2295 = sbr.rel (%p2293) target = $region80
      $region79: #{dqn_forward.1} parent=75 // pred_region
        %p2296 = scmp.lt.s32.totalorder %s24, 1
        %s2297 = scalar_select %p2296, %s24, 1
        %s2298 = smul.addr %s2297, 8
        %s2299 = scalar_lea.vmem %s12, %s2298
      $region80: #{dqn_forward.1} parent=75 // pred_fallthru
        _
    $region76: #{dqn_forward.1} parent=5 // pred_fallthru
      _
  $region6: #{dqn_forward.1} parent=0 // loop_footer
    %s22 = sadd.s32 1, %s18
  $region7: #{dqn_forward.1} parent=0 // loop_footer_branch
    %17 = sbr.rel target = $region3
  $region8: #{dqn_forward.1} parent=0 // loop_exit
    _

</llo_original>
